<compile_context>
chip_gen: v6e
topology: v6e:2x2x1
jax: 0.10.0
libtpu: 0.0.40
codegen_flags: <defaults>
</compile_context>

<pallas_src>
import jax
import jax.numpy as jnp
from jax.experimental import pallas as pl
from jax.experimental.pallas import tpu as pltpu


def _round_up(x, m):
    return (x + m - 1) // m * m


def encoder_kernel(w_ref, mk_ref, mvw1_ref, b1_ref, w2_ref, b2_ref,
                   w3_ref, b3_ref, out_ref):
    bt, n, dp = w_ref.shape
    s = mk_ref.shape[1]

    w = w_ref[...]                                   # (bt, n, dp) bf16
    w2d = w.reshape(bt * n, dp)                      # flatten batch tile for MXU

    # ---- ExternalAttention ----
    attn = jnp.dot(w2d, mk_ref[...],
                   preferred_element_type=jnp.float32)        # (bt*n, S) f32
    attn = attn.reshape(bt, n, s)
    # softmax over the sequence axis (PyTorch dim=1 of (B, N, S))
    attn = attn - jnp.max(attn, axis=1, keepdims=True)
    attn = jnp.exp(attn)
    attn = attn * pl.reciprocal(jnp.sum(attn, axis=1, keepdims=True), approx=True)
    # row-normalize over S (PyTorch dim=2)
    attn = attn * pl.reciprocal(jnp.sum(attn, axis=2, keepdims=True), approx=True)
    attn2d = attn.reshape(bt * n, s).astype(mvw1_ref.dtype)

    # ---- MLP with ReLU (Mv folded into W1: (attn @ Mv) @ W1 == attn @ (Mv@W1)) ----
    h1 = jnp.dot(attn2d, mvw1_ref[...], preferred_element_type=jnp.float32)
    h1 = jnp.maximum(h1 + b1_ref[...], 0.0).astype(w2_ref.dtype)
    h2 = jnp.dot(h1, w2_ref[...], preferred_element_type=jnp.float32)
    h2 = jnp.maximum(h2 + b2_ref[...], 0.0).astype(w3_ref.dtype)
    z = jnp.dot(h2, w3_ref[...], preferred_element_type=jnp.float32)
    z = jnp.maximum(z + b3_ref[...], 0.0)

    out_ref[...] = z.reshape(bt, n, z.shape[-1])     # lane-dense (bt, N, 128) store


def encoder_forward(w, params, *, b_tile=32, compute_dtype=jnp.bfloat16):
    """w: (B, N, D) float32 -> z: (B, N, latent) float32."""
    B, N, D = w.shape
    mk, mv, w1, b1, w2, b2, w3, b3 = params
    S = mk.shape[1]
    H1, H2, L = w1.shape[1], w2.shape[1], w3.shape[1]

    # Lane padding to multiples of 128 (zeros -> exact same math, ReLU keeps
    # padded columns at 0).
    Dp, H1p, H2p, Lp = (_round_up(d, 128) for d in (D, H1, H2, L))

    # Fold Mv into W1 once, in f32.
    mvw1 = mv @ w1                                            # (S, H1)

    pad2 = lambda a, r, c: jnp.pad(a, ((0, r - a.shape[0]), (0, c - a.shape[1])))
    mk_p = pad2(mk, Dp, S).astype(compute_dtype)
    mvw1_p = pad2(mvw1, S, H1p).astype(compute_dtype)
    w2_p = pad2(w2, H1p, H2p).astype(compute_dtype)
    w3_p = pad2(w3, H2p, Lp).astype(compute_dtype)
    b1_p = pad2(b1.reshape(1, -1), 1, H1p).astype(jnp.float32)
    b2_p = pad2(b2.reshape(1, -1), 1, H2p).astype(jnp.float32)
    b3_p = pad2(b3.reshape(1, -1), 1, Lp).astype(jnp.float32)

    # Batch tiling: several batch elements per grid step; pad B so every step
    # is full (padded batch rows are sliced off at the end).
    bt = max(1, min(b_tile, B))
    Bp = _round_up(B, bt)
    w_p = jnp.pad(w, ((0, Bp - B), (0, 0), (0, Dp - D))).astype(compute_dtype)

    # Constant-index weight blocks (full array, resident across the grid).
    # NOTE: pipeline_mode=pl.Buffered(1) could shave a redundant second buffer
    # (~220 KB total) but is skipped for robustness; VMEM is far from tight.
    full = lambda arr: pl.BlockSpec(arr.shape, lambda b: (0,) * arr.ndim)

    out = pl.pallas_call(
        encoder_kernel,
        out_shape=jax.ShapeDtypeStruct((Bp, N, Lp), jnp.float32),
        grid_spec=pltpu.PrefetchScalarGridSpec(
            num_scalar_prefetch=0,
            grid=(Bp // bt,),
            in_specs=[
                pl.BlockSpec((bt, N, Dp), lambda b: (b, 0, 0)),   # input tile
                full(mk_p), full(mvw1_p), full(b1_p),
                full(w2_p), full(b2_p), full(w3_p), full(b3_p),
            ],
            out_specs=pl.BlockSpec((bt, N, Lp), lambda b: (b, 0, 0)),
        ),
        compiler_params=pltpu.CompilerParams(
            dimension_semantics=("parallel",)),
    )(w_p, mk_p, mvw1_p, b1_p, w2_p, b2_p, w3_p, b3_p)

    return out[:B, :, :L]


def make_params(key, in_size=750, latent_size=32, S=8):
    """Deterministic synthetic parameters (shapes match the PyTorch module).

    Linear weights stored as (in, out) so the kernel computes x @ W + b, which
    equals PyTorch's x @ W_torch.T + b.
    """
    h1 = in_size // 2          # 375
    h2 = in_size // 4          # 187
    ks = jax.random.split(key, 8)
    sc = 0.05
    mk = sc * jax.random.normal(ks[0], (in_size, S), jnp.float32)
    mv = sc * jax.random.normal(ks[1], (S, in_size), jnp.float32)
    w1 = sc * jax.random.normal(ks[2], (in_size, h1), jnp.float32)
    b1 = sc * jax.random.normal(ks[3], (1, h1), jnp.float32)
    w2 = sc * jax.random.normal(ks[4], (h1, h2), jnp.float32)
    b2 = sc * jax.random.normal(ks[5], (1, h2), jnp.float32)
    w3 = sc * jax.random.normal(ks[6], (h2, latent_size), jnp.float32)
    b3 = sc * jax.random.normal(ks[7], (1, latent_size), jnp.float32)
    return (mk, mv, w1, b1, w2, b2, w3, b3)


def encoder_ref(w, params):
    """Pure-JAX f32 reference mirroring the PyTorch forward exactly."""
    mk, mv, w1, b1, w2, b2, w3, b3 = params
    attn = jnp.einsum('bnd,ds->bns', w, mk)
    attn = jax.nn.softmax(attn, axis=1)                       # softmax over N
    attn = attn / jnp.sum(attn, axis=2, keepdims=True)
    out = jnp.einsum('bns,sd->bnd', attn, mv)
    out = jax.nn.relu(out @ w1 + b1)
    out = jax.nn.relu(out @ w2 + b2)
    return jax.nn.relu(out @ w3 + b3)


if __name__ == "__main__":
    B, N, D, L = 4, 8, 750, 32          # d_model=750 is hardcoded by ExternalAttention
    key = jax.random.PRNGKey(0)
    kx, kp = jax.random.split(key)
    w = jax.random.normal(kx, (B, N, D), jnp.float32)
    params = make_params(kp, in_size=D, latent_size=L, S=8)

    # b_tile=2 -> grid of 2 (both v7x TensorCores get work even at demo size).
    z = encoder_forward(w, params, b_tile=2)
    z = jax.block_until_ready(z)

    z_ref = encoder_ref(w, params)
    assert z.shape == (B, N, L)
    # bf16 weights/activations + approx reciprocal => slightly looser tolerance
    assert jnp.allclose(z, z_ref, atol=1e-2, rtol=2e-2), "mismatch vs reference"
    print("KERNEL_OK")
</pallas_src>

<mosaic_0001>
module attributes {stable_mosaic.version = 11 : i64} {
  func.func @encoder_kernel(%arg0: i32, %arg1: memref<2x8x768xbf16, #tpu.memory_space<vmem>>, %arg2: memref<768x8xbf16, #tpu.memory_space<vmem>>, %arg3: memref<8x384xbf16, #tpu.memory_space<vmem>>, %arg4: memref<1x384xf32, #tpu.memory_space<vmem>>, %arg5: memref<384x256xbf16, #tpu.memory_space<vmem>>, %arg6: memref<1x256xf32, #tpu.memory_space<vmem>>, %arg7: memref<256x128xbf16, #tpu.memory_space<vmem>>, %arg8: memref<1x128xf32, #tpu.memory_space<vmem>>, %arg9: memref<2x8x128xf32, #tpu.memory_space<vmem>>) attributes {dimension_semantics = [#tpu.dimension_semantics<parallel>], iteration_bounds = array<i64: 2>, scalar_prefetch = 0 : i64, scratch_operands = 0 : i64, tpu.core_type = #tpu.core_type<tc>, window_params = [{transform_indices = @transform_0, window_bounds = array<i64: 2, 8, 768>}, {pipeline_mode = #tpu.pipeline_mode<synchronous>, transform_indices = @transform_1, window_bounds = array<i64: 768, 8>}, {pipeline_mode = #tpu.pipeline_mode<synchronous>, transform_indices = @transform_2, window_bounds = array<i64: 8, 384>}, {pipeline_mode = #tpu.pipeline_mode<synchronous>, transform_indices = @transform_3, window_bounds = array<i64: 1, 384>}, {pipeline_mode = #tpu.pipeline_mode<synchronous>, transform_indices = @transform_4, window_bounds = array<i64: 384, 256>}, {pipeline_mode = #tpu.pipeline_mode<synchronous>, transform_indices = @transform_5, window_bounds = array<i64: 1, 256>}, {pipeline_mode = #tpu.pipeline_mode<synchronous>, transform_indices = @transform_6, window_bounds = array<i64: 256, 128>}, {pipeline_mode = #tpu.pipeline_mode<synchronous>, transform_indices = @transform_7, window_bounds = array<i64: 1, 128>}, {transform_indices = @transform_8, window_bounds = array<i64: 2, 8, 128>}]} {
    %c0 = arith.constant 0 : index
    %c0_0 = arith.constant 0 : index
    %c0_1 = arith.constant 0 : index
    %0 = vector.load %arg1[%c0, %c0_0, %c0_1] : memref<2x8x768xbf16, #tpu.memory_space<vmem>>, vector<2x8x768xbf16>
    %1 = vector.shape_cast %0 : vector<2x8x768xbf16> to vector<16x768xbf16>
    %c0_2 = arith.constant 0 : index
    %c0_3 = arith.constant 0 : index
    %2 = vector.load %arg2[%c0_2, %c0_3] : memref<768x8xbf16, #tpu.memory_space<vmem>>, vector<768x8xbf16>
    %cst = arith.constant dense<0.000000e+00> : vector<16x8xf32>
    %3 = tpu.matmul %1, %2, %cst {dimension_numbers = #tpu.dot_dimension_numbers<[1], [0], [0], [1], [0, 0, 1, 1], [], []>} : vector<16x768xbf16>, vector<768x8xbf16>, vector<16x8xf32> -> vector<16x8xf32>
    %4 = vector.shape_cast %3 : vector<16x8xf32> to vector<2x8x8xf32>
    %cst_4 = arith.constant dense<0xFF800000> : vector<2x8xf32>
    %5 = vector.multi_reduction <maximumf>, %4, %cst_4 [1] : vector<2x8x8xf32> to vector<2x8xf32>
    %6 = vector.shape_cast %5 : vector<2x8xf32> to vector<2x1x8xf32>
    %7 = vector.broadcast %6 : vector<2x1x8xf32> to vector<2x8x8xf32>
    %8 = arith.subf %4, %7 : vector<2x8x8xf32>
    %9 = math.exp %8 : vector<2x8x8xf32>
    %cst_5 = arith.constant dense<0.000000e+00> : vector<2x8xf32>
    %10 = vector.multi_reduction <add>, %9, %cst_5 [1] : vector<2x8x8xf32> to vector<2x8xf32>
    %11 = vector.shape_cast %10 : vector<2x8xf32> to vector<2x1x8xf32>
    %12 = tpu.reciprocal %11 {approx = true} : vector<2x1x8xf32> -> vector<2x1x8xf32>
    %13 = vector.broadcast %12 : vector<2x1x8xf32> to vector<2x8x8xf32>
    %14 = arith.mulf %9, %13 : vector<2x8x8xf32>
    %cst_6 = arith.constant dense<0.000000e+00> : vector<2x8xf32>
    %15 = vector.multi_reduction <add>, %14, %cst_6 [2] : vector<2x8x8xf32> to vector<2x8xf32>
    %16 = vector.shape_cast %15 : vector<2x8xf32> to vector<2x8x1xf32>
    %17 = tpu.reciprocal %16 {approx = true} : vector<2x8x1xf32> -> vector<2x8x1xf32>
    %18 = vector.broadcast %17 : vector<2x8x1xf32> to vector<2x8x8xf32>
    %19 = arith.mulf %14, %18 : vector<2x8x8xf32>
    %20 = vector.shape_cast %19 : vector<2x8x8xf32> to vector<16x8xf32>
    %21 = arith.truncf %20 : vector<16x8xf32> to vector<16x8xbf16>
    %c0_7 = arith.constant 0 : index
    %c0_8 = arith.constant 0 : index
    %22 = vector.load %arg3[%c0_7, %c0_8] : memref<8x384xbf16, #tpu.memory_space<vmem>>, vector<8x384xbf16>
    %cst_9 = arith.constant dense<0.000000e+00> : vector<16x384xf32>
    %23 = tpu.matmul %21, %22, %cst_9 {dimension_numbers = #tpu.dot_dimension_numbers<[1], [0], [0], [1], [0, 0, 1, 1], [], []>} : vector<16x8xbf16>, vector<8x384xbf16>, vector<16x384xf32> -> vector<16x384xf32>
    %c0_10 = arith.constant 0 : index
    %c0_11 = arith.constant 0 : index
    %24 = vector.load %arg4[%c0_10, %c0_11] : memref<1x384xf32, #tpu.memory_space<vmem>>, vector<1x384xf32>
    %25 = vector.broadcast %24 : vector<1x384xf32> to vector<16x384xf32>
    %26 = arith.addf %23, %25 : vector<16x384xf32>
    %cst_12 = arith.constant 0.000000e+00 : f32
    %27 = vector.broadcast %cst_12 : f32 to vector<16x384xf32>
    %28 = arith.maximumf %26, %27 : vector<16x384xf32>
    %29 = arith.truncf %28 : vector<16x384xf32> to vector<16x384xbf16>
    %c0_13 = arith.constant 0 : index
    %c0_14 = arith.constant 0 : index
    %30 = vector.load %arg5[%c0_13, %c0_14] : memref<384x256xbf16, #tpu.memory_space<vmem>>, vector<384x256xbf16>
    %cst_15 = arith.constant dense<0.000000e+00> : vector<16x256xf32>
    %31 = tpu.matmul %29, %30, %cst_15 {dimension_numbers = #tpu.dot_dimension_numbers<[1], [0], [0], [1], [0, 0, 1, 1], [], []>} : vector<16x384xbf16>, vector<384x256xbf16>, vector<16x256xf32> -> vector<16x256xf32>
    %c0_16 = arith.constant 0 : index
    %c0_17 = arith.constant 0 : index
    %32 = vector.load %arg6[%c0_16, %c0_17] : memref<1x256xf32, #tpu.memory_space<vmem>>, vector<1x256xf32>
    %33 = vector.broadcast %32 : vector<1x256xf32> to vector<16x256xf32>
    %34 = arith.addf %31, %33 : vector<16x256xf32>
    %cst_18 = arith.constant 0.000000e+00 : f32
    %35 = vector.broadcast %cst_18 : f32 to vector<16x256xf32>
    %36 = arith.maximumf %34, %35 : vector<16x256xf32>
    %37 = arith.truncf %36 : vector<16x256xf32> to vector<16x256xbf16>
    %c0_19 = arith.constant 0 : index
    %c0_20 = arith.constant 0 : index
    %38 = vector.load %arg7[%c0_19, %c0_20] : memref<256x128xbf16, #tpu.memory_space<vmem>>, vector<256x128xbf16>
    %cst_21 = arith.constant dense<0.000000e+00> : vector<16x128xf32>
    %39 = tpu.matmul %37, %38, %cst_21 {dimension_numbers = #tpu.dot_dimension_numbers<[1], [0], [0], [1], [0, 0, 1, 1], [], []>} : vector<16x256xbf16>, vector<256x128xbf16>, vector<16x128xf32> -> vector<16x128xf32>
    %c0_22 = arith.constant 0 : index
    %c0_23 = arith.constant 0 : index
    %40 = vector.load %arg8[%c0_22, %c0_23] : memref<1x128xf32, #tpu.memory_space<vmem>>, vector<1x128xf32>
    %41 = vector.broadcast %40 : vector<1x128xf32> to vector<16x128xf32>
    %42 = arith.addf %39, %41 : vector<16x128xf32>
    %cst_24 = arith.constant 0.000000e+00 : f32
    %43 = vector.broadcast %cst_24 : f32 to vector<16x128xf32>
    %44 = arith.maximumf %42, %43 : vector<16x128xf32>
    %45 = vector.shape_cast %44 : vector<16x128xf32> to vector<2x8x128xf32>
    %c0_25 = arith.constant 0 : index
    %c0_26 = arith.constant 0 : index
    %c0_27 = arith.constant 0 : index
    %46 = vector.load %arg9[%c0_25, %c0_26, %c0_27] : memref<2x8x128xf32, #tpu.memory_space<vmem>>, vector<2x8x128xf32>
    tpu.vector_store %arg9[%c0_25, %c0_26, %c0_27], %45 {strides = array<i32>} : memref<2x8x128xf32, #tpu.memory_space<vmem>>, vector<2x8x128xf32>,
    return
  }
  func.func @transform_0(%arg0: i32) -> (i32, i32, i32) {
    %c0_i32 = arith.constant 0 : i32
    %c0_i32_0 = arith.constant 0 : i32
    %c0_i32_1 = arith.constant 0 : i32
    return %arg0, %c0_i32, %c0_i32_0 : i32, i32, i32
  }
  func.func @transform_1(%arg0: i32) -> (i32, i32) {
    %c0_i32 = arith.constant 0 : i32
    %c0_i32_0 = arith.constant 0 : i32
    %c0_i32_1 = arith.constant 0 : i32
    return %c0_i32, %c0_i32_0 : i32, i32
  }
  func.func @transform_2(%arg0: i32) -> (i32, i32) {
    %c0_i32 = arith.constant 0 : i32
    %c0_i32_0 = arith.constant 0 : i32
    %c0_i32_1 = arith.constant 0 : i32
    return %c0_i32, %c0_i32_0 : i32, i32
  }
  func.func @transform_3(%arg0: i32) -> (i32, i32) {
    %c0_i32 = arith.constant 0 : i32
    %c0_i32_0 = arith.constant 0 : i32
    %c0_i32_1 = arith.constant 0 : i32
    return %c0_i32, %c0_i32_0 : i32, i32
  }
  func.func @transform_4(%arg0: i32) -> (i32, i32) {
    %c0_i32 = arith.constant 0 : i32
    %c0_i32_0 = arith.constant 0 : i32
    %c0_i32_1 = arith.constant 0 : i32
    return %c0_i32, %c0_i32_0 : i32, i32
  }
  func.func @transform_5(%arg0: i32) -> (i32, i32) {
    %c0_i32 = arith.constant 0 : i32
    %c0_i32_0 = arith.constant 0 : i32
    %c0_i32_1 = arith.constant 0 : i32
    return %c0_i32, %c0_i32_0 : i32, i32
  }
  func.func @transform_6(%arg0: i32) -> (i32, i32) {
    %c0_i32 = arith.constant 0 : i32
    %c0_i32_0 = arith.constant 0 : i32
    %c0_i32_1 = arith.constant 0 : i32
    return %c0_i32, %c0_i32_0 : i32, i32
  }
  func.func @transform_7(%arg0: i32) -> (i32, i32) {
    %c0_i32 = arith.constant 0 : i32
    %c0_i32_0 = arith.constant 0 : i32
    %c0_i32_1 = arith.constant 0 : i32
    return %c0_i32, %c0_i32_0 : i32, i32
  }
  func.func @transform_8(%arg0: i32) -> (i32, i32, i32) {
    %c0_i32 = arith.constant 0 : i32
    %c0_i32_0 = arith.constant 0 : i32
    %c0_i32_1 = arith.constant 0 : i32
    return %arg0, %c0_i32, %c0_i32_0 : i32, i32, i32
  }
}

</mosaic_0001>

<llo_original>
// kernel: tpu_custom_call.1
$region0: #{tpu_custom_call.1}
  #allocation0 [shape = 'u32[]', space=smem, size = 0x4, offset = 0x4, fixed_abs, tag = 'smem constant byte address 0x4 - core index']
  #allocation1 [shape = 'u32[144,128]{1,0:T(1,128)}', space=vmem, size = 0x12000, scoped, tag = 'internal scratch']
  %s0 = inlined_call_operand.hbm [shape: bf16[4,8,768], index: 0, kind: input, shape index: {}]
  %s1 = inlined_call_operand.vmem [shape: bf16[768,8], index: 1, kind: input, shape index: {}]
  %s2 = inlined_call_operand.vmem [shape: bf16[8,384], index: 2, kind: input, shape index: {}]
  %s3 = inlined_call_operand.vmem [shape: f32[1,384], index: 3, kind: input, shape index: {}]
  %s4 = inlined_call_operand.vmem [shape: bf16[384,256], index: 4, kind: input, shape index: {}]
  %s5 = inlined_call_operand.vmem [shape: f32[1,256], index: 5, kind: input, shape index: {}]
  %s6 = inlined_call_operand.hbm [shape: bf16[256,128], index: 6, kind: input, shape index: {}]
  %s7 = inlined_call_operand.vmem [shape: f32[1,128], index: 7, kind: input, shape index: {}]
  %s8 = inlined_call_operand.hbm [shape: f32[4,8,128], index: 8, kind: output, shape index: {}]
  %s9 = sld [smem:[#allocation0]]
  $region73: #{tpu_custom_call.1} parent=0
    _
  %s11 = ssub.s32 1, %s9
  %s12 = scalar_select 0, %s11, %s9
  $region1: #{tpu_custom_call.1} parent=0
    #allocation2 [shape = 'u8[49152]{0}', space=vmem, size = 0xc000, scoped, tag = 'input window, operand 0']
    #allocation3 [shape = 's32[2]{0}', space=sflag, size = 0x8, scoped, tag = 'scoped memory for tpu_custom_call.1']
    #allocation4 [shape = 's32[2]{0}', space=sflag, size = 0x8, scoped, tag = 'scoped memory for tpu_custom_call.1']
    #allocation5 [shape = 'u8[65536]{0}', space=vmem, size = 0x10000, scoped, tag = 'input window, operand 6, single buffered']
    #allocation6 [shape = 's32[1]{0}', space=sflag, size = 0x4, scoped, tag = 'scoped memory for tpu_custom_call.1']
    #allocation7 [shape = 'u8[16384]{0}', space=vmem, size = 0x4000, scoped, tag = 'output window, operand 0']
    %13 = vsyncpa [#allocation3], 0
    %s14 = scalar_lea.sflag [#allocation3], 1
    %15 = vsyncpa %s14, 0
    %16 = vsyncpa [#allocation6], 0
    %17 = vsyncpa [#allocation4], 0
    %s18 = scalar_lea.sflag [#allocation4], 1
    %19 = vsyncpa %s18, 0
    loop: start=0, step=1, limit=4
    $region2: #{tpu_custom_call.1} parent=1 // loop_pre_header
      _
    $region3: #{tpu_custom_call.1} parent=1 // loop_header
      %s21 = sphi 0, %s25
      %p22 = scmp.ge.s32.totalorder %s21, 4
      %s31 = sphi 0, %s33
      %s34 = sphi 0, %s31
      %s35 = sphi 0, %s34
      %s51 = sphi 0, %s35
      %s55 = sphi 0, %s55
      %s57 = sphi 0, %s55
      %s58 = sphi 0, %s57
      %s72 = sphi 0, %s58
      %s76 = sphi 0, %s76
      %s78 = sphi 0, %s76
      %s79 = sphi 0, %s78
      %s93 = sphi 0, %s79
      %s97 = sphi 0, %s97
      %s99 = sphi 0, %s97
      %s100 = sphi 0, %s99
      %s114 = sphi 0, %s100
      %s118 = sphi 0, %s118
      %s120 = sphi 0, %s118
      %s121 = sphi 0, %s120
      %s135 = sphi 0, %s121
      %s139 = sphi 0, %s139
      %s141 = sphi 0, %s139
      %s142 = sphi 0, %s141
      %s156 = sphi 0, %s142
      %s160 = sphi 0, %s160
      %s162 = sphi 0, %s160
      %s163 = sphi 0, %s162
      %s177 = sphi 0, %s163
      %s181 = sphi 0, %s181
      %s183 = sphi 0, %s181
      %s184 = sphi 0, %s183
      %s198 = sphi 0, %s184
      %s204 = sphi 0, %s206
      %s207 = sphi 0, %s204
      %s208 = sphi 0, %s207
      %s224 = sphi 0, %s208
    $region4: #{tpu_custom_call.1} parent=1 // loop_header_branch
      %24 = sbr.rel (%p22) target = $region8
    $region5: #{tpu_custom_call.1} parent=1 // loop_body
      %s26 = ssub.s32 %s21, 1
      %s27 = ssub.s32 %s21, 2
      %s28 = sadd.s32 %s21, 1
      %s29 = ssub.s32 %s21, %s28
      %p30 = scmp.eq.s32.totalorder %s29, 0
      %s32 = sadd.s32 %s31, 1
      %s33 = scalar_select %p30, %s31, %s32
      %p36 = pneg %p30
      %p37 = scmp.eq.s32.totalorder %s21, 1
      %p38 = por %p36, %p37
      %p39 = scmp.ne.s32.totalorder %s31, %s34
      %p40 = scmp.eq.s32.totalorder %s21, 0
      %p41 = por %p39, %p40
      %p42 = scmp.ne.s32.totalorder %s31, %s34
      %p43 = scmp.eq.s32.totalorder %s26, 1
      %p44 = por %p42, %p43
      %p45 = scmp.ne.s32.totalorder %s34, %s35
      %p46 = scmp.eq.s32.totalorder %s26, 0
      %p47 = por %p45, %p46
      %p48 = scmp.ne.s32.totalorder %s34, %s35
      %p49 = scmp.eq.s32.totalorder %s27, 1
      %p50 = por %p48, %p49
      %p52 = scmp.ne.s32.totalorder %s35, %s51
      %p53 = scmp.eq.s32.totalorder %s27, 0
      %p54 = por %p52, %p53
      %s56 = sadd.s32 %s55, 1
      %p59 = scmp.eq.s32.totalorder %s21, 1
      %p60 = scmp.ne.s32.totalorder %s55, %s57
      %p61 = scmp.eq.s32.totalorder %s21, 0
      %p62 = por %p60, %p61
      %p63 = scmp.ne.s32.totalorder %s55, %s57
      %p64 = scmp.eq.s32.totalorder %s26, 1
      %p65 = por %p63, %p64
      %p66 = scmp.ne.s32.totalorder %s57, %s58
      %p67 = scmp.eq.s32.totalorder %s26, 0
      %p68 = por %p66, %p67
      %p69 = scmp.ne.s32.totalorder %s57, %s58
      %p70 = scmp.eq.s32.totalorder %s27, 1
      %p71 = por %p69, %p70
      %p73 = scmp.ne.s32.totalorder %s58, %s72
      %p74 = scmp.eq.s32.totalorder %s27, 0
      %p75 = por %p73, %p74
      %s77 = sadd.s32 %s76, 1
      %p80 = scmp.eq.s32.totalorder %s21, 1
      %p81 = scmp.ne.s32.totalorder %s76, %s78
      %p82 = scmp.eq.s32.totalorder %s21, 0
      %p83 = por %p81, %p82
      %p84 = scmp.ne.s32.totalorder %s76, %s78
      %p85 = scmp.eq.s32.totalorder %s26, 1
      %p86 = por %p84, %p85
      %p87 = scmp.ne.s32.totalorder %s78, %s79
      %p88 = scmp.eq.s32.totalorder %s26, 0
      %p89 = por %p87, %p88
      %p90 = scmp.ne.s32.totalorder %s78, %s79
      %p91 = scmp.eq.s32.totalorder %s27, 1
      %p92 = por %p90, %p91
      %p94 = scmp.ne.s32.totalorder %s79, %s93
      %p95 = scmp.eq.s32.totalorder %s27, 0
      %p96 = por %p94, %p95
      %s98 = sadd.s32 %s97, 1
      %p101 = scmp.eq.s32.totalorder %s21, 1
      %p102 = scmp.ne.s32.totalorder %s97, %s99
      %p103 = scmp.eq.s32.totalorder %s21, 0
      %p104 = por %p102, %p103
      %p105 = scmp.ne.s32.totalorder %s97, %s99
      %p106 = scmp.eq.s32.totalorder %s26, 1
      %p107 = por %p105, %p106
      %p108 = scmp.ne.s32.totalorder %s99, %s100
      %p109 = scmp.eq.s32.totalorder %s26, 0
      %p110 = por %p108, %p109
      %p111 = scmp.ne.s32.totalorder %s99, %s100
      %p112 = scmp.eq.s32.totalorder %s27, 1
      %p113 = por %p111, %p112
      %p115 = scmp.ne.s32.totalorder %s100, %s114
      %p116 = scmp.eq.s32.totalorder %s27, 0
      %p117 = por %p115, %p116
      %s119 = sadd.s32 %s118, 1
      %p122 = scmp.eq.s32.totalorder %s21, 1
      %p123 = scmp.ne.s32.totalorder %s118, %s120
      %p124 = scmp.eq.s32.totalorder %s21, 0
      %p125 = por %p123, %p124
      %p126 = scmp.ne.s32.totalorder %s118, %s120
      %p127 = scmp.eq.s32.totalorder %s26, 1
      %p128 = por %p126, %p127
      %p129 = scmp.ne.s32.totalorder %s120, %s121
      %p130 = scmp.eq.s32.totalorder %s26, 0
      %p131 = por %p129, %p130
      %p132 = scmp.ne.s32.totalorder %s120, %s121
      %p133 = scmp.eq.s32.totalorder %s27, 1
      %p134 = por %p132, %p133
      %p136 = scmp.ne.s32.totalorder %s121, %s135
      %p137 = scmp.eq.s32.totalorder %s27, 0
      %p138 = por %p136, %p137
      %s140 = sadd.s32 %s139, 1
      %p143 = scmp.eq.s32.totalorder %s21, 1
      %p144 = scmp.ne.s32.totalorder %s139, %s141
      %p145 = scmp.eq.s32.totalorder %s21, 0
      %p146 = por %p144, %p145
      %p147 = scmp.ne.s32.totalorder %s139, %s141
      %p148 = scmp.eq.s32.totalorder %s26, 1
      %p149 = por %p147, %p148
      %p150 = scmp.ne.s32.totalorder %s141, %s142
      %p151 = scmp.eq.s32.totalorder %s26, 0
      %p152 = por %p150, %p151
      %p153 = scmp.ne.s32.totalorder %s141, %s142
      %p154 = scmp.eq.s32.totalorder %s27, 1
      %p155 = por %p153, %p154
      %p157 = scmp.ne.s32.totalorder %s142, %s156
      %p158 = scmp.eq.s32.totalorder %s27, 0
      %p159 = por %p157, %p158
      %s161 = sadd.s32 %s160, 1
      %p164 = scmp.eq.s32.totalorder %s21, 1
      %p165 = scmp.ne.s32.totalorder %s160, %s162
      %p166 = scmp.eq.s32.totalorder %s21, 0
      %p167 = por %p165, %p166
      %p168 = scmp.ne.s32.totalorder %s160, %s162
      %p169 = scmp.eq.s32.totalorder %s26, 1
      %p170 = por %p168, %p169
      %p171 = scmp.ne.s32.totalorder %s162, %s163
      %p172 = scmp.eq.s32.totalorder %s26, 0
      %p173 = por %p171, %p172
      %p174 = scmp.ne.s32.totalorder %s162, %s163
      %p175 = scmp.eq.s32.totalorder %s27, 1
      %p176 = por %p174, %p175
      %p178 = scmp.ne.s32.totalorder %s163, %s177
      %p179 = scmp.eq.s32.totalorder %s27, 0
      %p180 = por %p178, %p179
      %s182 = sadd.s32 %s181, 1
      %p185 = scmp.eq.s32.totalorder %s21, 1
      %p186 = scmp.ne.s32.totalorder %s181, %s183
      %p187 = scmp.eq.s32.totalorder %s21, 0
      %p188 = por %p186, %p187
      %p189 = scmp.ne.s32.totalorder %s181, %s183
      %p190 = scmp.eq.s32.totalorder %s26, 1
      %p191 = por %p189, %p190
      %p192 = scmp.ne.s32.totalorder %s183, %s184
      %p193 = scmp.eq.s32.totalorder %s26, 0
      %p194 = por %p192, %p193
      %p195 = scmp.ne.s32.totalorder %s183, %s184
      %p196 = scmp.eq.s32.totalorder %s27, 1
      %p197 = por %p195, %p196
      %p199 = scmp.ne.s32.totalorder %s184, %s198
      %p200 = scmp.eq.s32.totalorder %s27, 0
      %p201 = por %p199, %p200
      %s202 = ssub.s32 %s21, %s28
      %p203 = scmp.eq.s32.totalorder %s202, 0
      %s205 = sadd.s32 %s204, 1
      %s206 = scalar_select %p203, %s204, %s205
      %p209 = pneg %p203
      %p210 = scmp.eq.s32.totalorder %s21, 1
      %p211 = por %p209, %p210
      %p212 = scmp.ne.s32.totalorder %s204, %s207
      %p213 = scmp.eq.s32.totalorder %s21, 0
      %p214 = por %p212, %p213
      %p215 = scmp.ne.s32.totalorder %s204, %s207
      %p216 = scmp.eq.s32.totalorder %s26, 1
      %p217 = por %p215, %p216
      %p218 = scmp.ne.s32.totalorder %s207, %s208
      %p219 = scmp.eq.s32.totalorder %s26, 0
      %p220 = por %p218, %p219
      %p221 = scmp.ne.s32.totalorder %s207, %s208
      %p222 = scmp.eq.s32.totalorder %s27, 1
      %p223 = por %p221, %p222
      %p225 = scmp.ne.s32.totalorder %s208, %s224
      %p226 = scmp.eq.s32.totalorder %s27, 0
      %p227 = por %p225, %p226
      %p228 = scmp.le.s32.totalorder 1, %s21
      %p229 = scmp.lt.s32.totalorder %s21, 3
      %p230 = pnand %p228, %p229
      %p231 = pneg %p230
      // Predicated region
      $region9: #{tpu_custom_call.1} parent=5 // pred_check
        _
      $region10: #{tpu_custom_call.1} parent=5 // pred_check_branch
        %233 = sbr.rel (%p230) target = $region12
      $region11: #{tpu_custom_call.1} parent=5 // pred_region
        %s234 = ssub.s32 %s21, 1
        // Predicated region
        $region13: #{tpu_custom_call.1} parent=11 // pred_check
          %p235 = pneg %p68
        $region14: #{tpu_custom_call.1} parent=11 // pred_check_branch
          %237 = sbr.rel (%p235) target = $region16
        $region15: #{tpu_custom_call.1} parent=11 // pred_region
          _
        $region16: #{tpu_custom_call.1} parent=11 // pred_fallthru
          _
        // Predicated region
        $region17: #{tpu_custom_call.1} parent=11 // pred_check
          %p238 = pneg %p89
        $region18: #{tpu_custom_call.1} parent=11 // pred_check_branch
          %240 = sbr.rel (%p238) target = $region20
        $region19: #{tpu_custom_call.1} parent=11 // pred_region
          _
        $region20: #{tpu_custom_call.1} parent=11 // pred_fallthru
          _
        // Predicated region
        $region21: #{tpu_custom_call.1} parent=11 // pred_check
          %p241 = pneg %p110
        $region22: #{tpu_custom_call.1} parent=11 // pred_check_branch
          %243 = sbr.rel (%p241) target = $region24
        $region23: #{tpu_custom_call.1} parent=11 // pred_region
          _
        $region24: #{tpu_custom_call.1} parent=11 // pred_fallthru
          _
        // Predicated region
        $region25: #{tpu_custom_call.1} parent=11 // pred_check
          %p244 = pneg %p131
        $region26: #{tpu_custom_call.1} parent=11 // pred_check_branch
          %246 = sbr.rel (%p244) target = $region28
        $region27: #{tpu_custom_call.1} parent=11 // pred_region
          _
        $region28: #{tpu_custom_call.1} parent=11 // pred_fallthru
          _
        // Predicated region
        $region29: #{tpu_custom_call.1} parent=11 // pred_check
          %p247 = pneg %p152
        $region30: #{tpu_custom_call.1} parent=11 // pred_check_branch
          %249 = sbr.rel (%p247) target = $region32
        $region31: #{tpu_custom_call.1} parent=11 // pred_region
          _
        $region32: #{tpu_custom_call.1} parent=11 // pred_fallthru
          _
        // Predicated region
        $region33: #{tpu_custom_call.1} parent=11 // pred_check
          %p250 = pneg %p173
        $region34: #{tpu_custom_call.1} parent=11 // pred_check_branch
          %252 = sbr.rel (%p250) target = $region36
        $region35: #{tpu_custom_call.1} parent=11 // pred_region
          %s254 = ssub.s32 2048, 2048
          %255 = vsyncadd [#allocation6], %s254
          %s256 = sshll.u32 [#allocation5], 4
          %s257 = int_to_ptr.vmem [resolvable:$true] %s256
          %262 = dma.hbm_to_vmem [thread:$0]  %s6, 2048, %s257, [#allocation6], 64, 64, 4
        $region36: #{tpu_custom_call.1} parent=11 // pred_fallthru
          _
        // Predicated region
        $region37: #{tpu_custom_call.1} parent=11 // pred_check
          %p263 = pneg %p194
        $region38: #{tpu_custom_call.1} parent=11 // pred_check_branch
          %265 = sbr.rel (%p263) target = $region40
        $region39: #{tpu_custom_call.1} parent=11 // pred_region
          _
        $region40: #{tpu_custom_call.1} parent=11 // pred_fallthru
          _
      $region12: #{tpu_custom_call.1} parent=5 // pred_fallthru
        _
      %p266 = scmp.lt.s32.totalorder %s21, 2
      // Predicated region
      $region41: #{tpu_custom_call.1} parent=5 // pred_check
        %p267 = pneg %p266
      $region42: #{tpu_custom_call.1} parent=5 // pred_check_branch
        %269 = sbr.rel (%p267) target = $region44
      $region43: #{tpu_custom_call.1} parent=5 // pred_region
        // Predicated region
        $region45: #{tpu_custom_call.1} parent=43 // pred_check
          %p270 = pneg %p41
        $region46: #{tpu_custom_call.1} parent=43 // pred_check_branch
          %272 = sbr.rel (%p270) target = $region48
        $region47: #{tpu_custom_call.1} parent=43 // pred_region
          %s273 = sand.u32 %s31, 1
          %s274 = scalar_lea.sflag [#allocation3], %s273
          %s275 = sand.u32 %s31, 1
          %s276 = smul.addr %s275, 48
          %s277 = scalar_lea.vmem [#allocation2], %s276
          %s278 = smul.u32 2, %s21
          %s280 = ssub.s32 768, 768
          %281 = vsyncadd %s274, %s280
          %s282 = smul.addr %s278, 6
          %s283 = smul.addr %s282, 64
          %s284 = scalar_lea.hbm %s0, %s283
          %s285 = sshll.u32 %s277, 4
          %s286 = int_to_ptr.vmem [resolvable:$true] %s285
          %291 = dma.hbm_to_vmem [thread:$0]  %s284, 768, %s286, %s274, 384, 384, 24
        $region48: #{tpu_custom_call.1} parent=43 // pred_fallthru
          _
      $region44: #{tpu_custom_call.1} parent=5 // pred_fallthru
        _
      %p292 = scmp.le.s32.totalorder 1, %s21
      %p293 = scmp.lt.s32.totalorder %s21, 3
      %p294 = pnand %p292, %p293
      %p295 = pneg %p294
      // Predicated region
      $region49: #{tpu_custom_call.1} parent=5 // pred_check
        _
      $region50: #{tpu_custom_call.1} parent=5 // pred_check_branch
        %297 = sbr.rel (%p294) target = $region52
      $region51: #{tpu_custom_call.1} parent=5 // pred_region
        %s298 = ssub.s32 %s21, 1
        %s299 = sand.u32 %s34, 1
        %s300 = scalar_lea.sflag [#allocation3], %s299
        %s301 = sand.u32 %s34, 1
        %s302 = smul.addr %s301, 48
        %s303 = scalar_lea.vmem [#allocation2], %s302
        // Predicated region
        $region53: #{tpu_custom_call.1} parent=51 // pred_check
          %p304 = pneg %p47
        $region54: #{tpu_custom_call.1} parent=51 // pred_check_branch
          %306 = sbr.rel (%p304) target = $region56
        $region55: #{tpu_custom_call.1} parent=51 // pred_region
          %307 = dma.done %s300, 768
        $region56: #{tpu_custom_call.1} parent=51 // pred_fallthru
          _
        // Predicated region
        $region57: #{tpu_custom_call.1} parent=51 // pred_check
          %p308 = pneg %p173
        $region58: #{tpu_custom_call.1} parent=51 // pred_check_branch
          %310 = sbr.rel (%p308) target = $region60
        $region59: #{tpu_custom_call.1} parent=51 // pred_region
          %311 = dma.done [#allocation6], 2048
        $region60: #{tpu_custom_call.1} parent=51 // pred_fallthru
          _
        %s312 = sand.u32 %s34, 1
        %s313 = scalar_lea.sflag [#allocation3], %s312
        %s314 = sand.u32 %s34, 1
        %s315 = smul.addr %s314, 48
        %s316 = scalar_lea.vmem [#allocation2], %s315
        %p317 = pneg %p47
        %p318 = pneg %p44
        %p319 = pneg %p68
        %p320 = pneg %p65
        %p321 = pneg %p89
        %p322 = pneg %p86
        %p323 = pneg %p110
        %p324 = pneg %p107
        %p325 = pneg %p131
        %p326 = pneg %p128
        %p327 = pneg %p152
        %p328 = pneg %p149
        %p329 = pneg %p173
        %p330 = pneg %p170
        %p331 = pneg %p194
        %p332 = pneg %p191
        %p333 = pneg %p220
        %p334 = pneg %p217
        %s335 = sand.u32 %s207, 1
        %s336 = scalar_lea.sflag [#allocation4], %s335
        %s337 = sand.u32 %s207, 1
        %s338 = smul.addr %s337, 16
        %s339 = scalar_lea.vmem [#allocation7], %s338
        %s340 = smul.u32 2, %s26
        %s341 = smul.u32 2, %s26
        %v343 = vld [vmem:[%s303] sm:$0xff]
        %v344 = vld [vmem:[%s303 + $0x8] sm:$0xff]
        %v345 = vld [vmem:[%s303 + $0x10] sm:$0xff]
        %v346 = vld [vmem:[%s303 + $0x18] sm:$0xff]
        %v347 = vld [vmem:[%s303 + $0x20] sm:$0xff]
        %v348 = vld [vmem:[%s303 + $0x28] sm:$0xff]
        %v349 = vld [vmem:[%s1] sm:$0xf]
        %v350 = vld [vmem:[%s1 + $0x4] sm:$0xf]
        %v351 = vld [vmem:[%s1 + $0x8] sm:$0xf]
        %v352 = vld [vmem:[%s1 + $0xc] sm:$0xf]
        %v353 = vld [vmem:[%s1 + $0x10] sm:$0xf]
        %v354 = vld [vmem:[%s1 + $0x14] sm:$0xf]
        %v355 = vld [vmem:[%s1 + $0x18] sm:$0xf]
        %v356 = vld [vmem:[%s1 + $0x1c] sm:$0xf]
        %v357 = vld [vmem:[%s1 + $0x20] sm:$0xf]
        %v358 = vld [vmem:[%s1 + $0x24] sm:$0xf]
        %v359 = vld [vmem:[%s1 + $0x28] sm:$0xf]
        %v360 = vld [vmem:[%s1 + $0x2c] sm:$0xf]
        %v361 = vld [vmem:[%s1 + $0x30] sm:$0xf]
        %v362 = vld [vmem:[%s1 + $0x34] sm:$0xf]
        %v363 = vld [vmem:[%s1 + $0x38] sm:$0xf]
        %v364 = vld [vmem:[%s1 + $0x3c] sm:$0xf]
        %v365 = vld [vmem:[%s1 + $0x40] sm:$0xf]
        %v366 = vld [vmem:[%s1 + $0x44] sm:$0xf]
        %v367 = vld [vmem:[%s1 + $0x48] sm:$0xf]
        %v368 = vld [vmem:[%s1 + $0x4c] sm:$0xf]
        %v369 = vld [vmem:[%s1 + $0x50] sm:$0xf]
        %v370 = vld [vmem:[%s1 + $0x54] sm:$0xf]
        %v371 = vld [vmem:[%s1 + $0x58] sm:$0xf]
        %v372 = vld [vmem:[%s1 + $0x5c] sm:$0xf]
        %v373 = vld [vmem:[%s1 + $0x60] sm:$0xf]
        %v374 = vld [vmem:[%s1 + $0x64] sm:$0xf]
        %v375 = vld [vmem:[%s1 + $0x68] sm:$0xf]
        %v376 = vld [vmem:[%s1 + $0x6c] sm:$0xf]
        %v377 = vld [vmem:[%s1 + $0x70] sm:$0xf]
        %v378 = vld [vmem:[%s1 + $0x74] sm:$0xf]
        %v379 = vld [vmem:[%s1 + $0x78] sm:$0xf]
        %v380 = vld [vmem:[%s1 + $0x7c] sm:$0xf]
        %v381 = vld [vmem:[%s1 + $0x80] sm:$0xf]
        %v382 = vld [vmem:[%s1 + $0x84] sm:$0xf]
        %v383 = vld [vmem:[%s1 + $0x88] sm:$0xf]
        %v384 = vld [vmem:[%s1 + $0x8c] sm:$0xf]
        %v385 = vld [vmem:[%s1 + $0x90] sm:$0xf]
        %v386 = vld [vmem:[%s1 + $0x94] sm:$0xf]
        %v387 = vld [vmem:[%s1 + $0x98] sm:$0xf]
        %v388 = vld [vmem:[%s1 + $0x9c] sm:$0xf]
        %v389 = vld [vmem:[%s1 + $0xa0] sm:$0xf]
        %v390 = vld [vmem:[%s1 + $0xa4] sm:$0xf]
        %v391 = vld [vmem:[%s1 + $0xa8] sm:$0xf]
        %v392 = vld [vmem:[%s1 + $0xac] sm:$0xf]
        %v393 = vld [vmem:[%s1 + $0xb0] sm:$0xf]
        %v394 = vld [vmem:[%s1 + $0xb4] sm:$0xf]
        %v395 = vld [vmem:[%s1 + $0xb8] sm:$0xf]
        %v396 = vld [vmem:[%s1 + $0xbc] sm:$0xf]
        %v397 = vld [vmem:[%s1 + $0xc0] sm:$0xf]
        %v398 = vld [vmem:[%s1 + $0xc4] sm:$0xf]
        %v399 = vld [vmem:[%s1 + $0xc8] sm:$0xf]
        %v400 = vld [vmem:[%s1 + $0xcc] sm:$0xf]
        %v401 = vld [vmem:[%s1 + $0xd0] sm:$0xf]
        %v402 = vld [vmem:[%s1 + $0xd4] sm:$0xf]
        %v403 = vld [vmem:[%s1 + $0xd8] sm:$0xf]
        %v404 = vld [vmem:[%s1 + $0xdc] sm:$0xf]
        %v405 = vld [vmem:[%s1 + $0xe0] sm:$0xf]
        %v406 = vld [vmem:[%s1 + $0xe4] sm:$0xf]
        %v407 = vld [vmem:[%s1 + $0xe8] sm:$0xf]
        %v408 = vld [vmem:[%s1 + $0xec] sm:$0xf]
        %v409 = vld [vmem:[%s1 + $0xf0] sm:$0xf]
        %v410 = vld [vmem:[%s1 + $0xf4] sm:$0xf]
        %v411 = vld [vmem:[%s1 + $0xf8] sm:$0xf]
        %v412 = vld [vmem:[%s1 + $0xfc] sm:$0xf]
        %v413 = vld [vmem:[%s1 + $0x100] sm:$0xf]
        %v414 = vld [vmem:[%s1 + $0x104] sm:$0xf]
        %v415 = vld [vmem:[%s1 + $0x108] sm:$0xf]
        %v416 = vld [vmem:[%s1 + $0x10c] sm:$0xf]
        %v417 = vld [vmem:[%s1 + $0x110] sm:$0xf]
        %v418 = vld [vmem:[%s1 + $0x114] sm:$0xf]
        %v419 = vld [vmem:[%s1 + $0x118] sm:$0xf]
        %v420 = vld [vmem:[%s1 + $0x11c] sm:$0xf]
        %v421 = vld [vmem:[%s1 + $0x120] sm:$0xf]
        %v422 = vld [vmem:[%s1 + $0x124] sm:$0xf]
        %v423 = vld [vmem:[%s1 + $0x128] sm:$0xf]
        %v424 = vld [vmem:[%s1 + $0x12c] sm:$0xf]
        %v425 = vld [vmem:[%s1 + $0x130] sm:$0xf]
        %v426 = vld [vmem:[%s1 + $0x134] sm:$0xf]
        %v427 = vld [vmem:[%s1 + $0x138] sm:$0xf]
        %v428 = vld [vmem:[%s1 + $0x13c] sm:$0xf]
        %v429 = vld [vmem:[%s1 + $0x140] sm:$0xf]
        %v430 = vld [vmem:[%s1 + $0x144] sm:$0xf]
        %v431 = vld [vmem:[%s1 + $0x148] sm:$0xf]
        %v432 = vld [vmem:[%s1 + $0x14c] sm:$0xf]
        %v433 = vld [vmem:[%s1 + $0x150] sm:$0xf]
        %v434 = vld [vmem:[%s1 + $0x154] sm:$0xf]
        %v435 = vld [vmem:[%s1 + $0x158] sm:$0xf]
        %v436 = vld [vmem:[%s1 + $0x15c] sm:$0xf]
        %v437 = vld [vmem:[%s1 + $0x160] sm:$0xf]
        %v438 = vld [vmem:[%s1 + $0x164] sm:$0xf]
        %v439 = vld [vmem:[%s1 + $0x168] sm:$0xf]
        %v440 = vld [vmem:[%s1 + $0x16c] sm:$0xf]
        %v441 = vld [vmem:[%s1 + $0x170] sm:$0xf]
        %v442 = vld [vmem:[%s1 + $0x174] sm:$0xf]
        %v443 = vld [vmem:[%s1 + $0x178] sm:$0xf]
        %v444 = vld [vmem:[%s1 + $0x17c] sm:$0xf]
        %v451 = vunpack.c.l.b16 %v343
        %v452 = vunpack.c.h.b16 %v343
        %v453 = vunpack.c.l.b16 %v344
        %v454 = vunpack.c.h.b16 %v344
        %v455 = vunpack.c.l.b16 %v345
        %v456 = vunpack.c.h.b16 %v345
        %v457 = vunpack.c.l.b16 %v346
        %v458 = vunpack.c.h.b16 %v346
        %v459 = vunpack.c.l.b16 %v347
        %v460 = vunpack.c.h.b16 %v347
        %v461 = vunpack.c.l.b16 %v348
        %v462 = vunpack.c.h.b16 %v348
        %v463 = vpack.c.b16 %v457, %v451
        %v464 = vpack.c.b16 %v458, %v452
        %v465 = vpack.c.b16 %v459, %v453
        %v466 = vpack.c.b16 %v460, %v454
        %v467 = vpack.c.b16 %v461, %v455
        %v468 = vpack.c.b16 %v462, %v456
        %v571 = vunpack.c.l.b16 %v349
        %v572 = vunpack.c.l.b16 %v350
        %v573 = vunpack.c.l.b16 %v351
        %v574 = vunpack.c.l.b16 %v352
        %v575 = vunpack.c.l.b16 %v353
        %v576 = vunpack.c.l.b16 %v354
        %v577 = vunpack.c.l.b16 %v355
        %v578 = vunpack.c.l.b16 %v356
        %v579 = vunpack.c.l.b16 %v357
        %v580 = vunpack.c.l.b16 %v358
        %v581 = vunpack.c.l.b16 %v359
        %v582 = vunpack.c.l.b16 %v360
        %v583 = vunpack.c.l.b16 %v361
        %v584 = vunpack.c.l.b16 %v362
        %v585 = vunpack.c.l.b16 %v363
        %v586 = vunpack.c.l.b16 %v364
        %v587 = vunpack.c.l.b16 %v365
        %v588 = vunpack.c.l.b16 %v366
        %v589 = vunpack.c.l.b16 %v367
        %v590 = vunpack.c.l.b16 %v368
        %v591 = vunpack.c.l.b16 %v369
        %v592 = vunpack.c.l.b16 %v370
        %v593 = vunpack.c.l.b16 %v371
        %v594 = vunpack.c.l.b16 %v372
        %v595 = vunpack.c.l.b16 %v373
        %v596 = vunpack.c.l.b16 %v374
        %v597 = vunpack.c.l.b16 %v375
        %v598 = vunpack.c.l.b16 %v376
        %v599 = vunpack.c.l.b16 %v377
        %v600 = vunpack.c.l.b16 %v378
        %v601 = vunpack.c.l.b16 %v379
        %v602 = vunpack.c.l.b16 %v380
        %v603 = vunpack.c.l.b16 %v381
        %v604 = vunpack.c.l.b16 %v382
        %v605 = vunpack.c.l.b16 %v383
        %v606 = vunpack.c.l.b16 %v384
        %v607 = vunpack.c.l.b16 %v385
        %v608 = vunpack.c.l.b16 %v386
        %v609 = vunpack.c.l.b16 %v387
        %v610 = vunpack.c.l.b16 %v388
        %v611 = vunpack.c.l.b16 %v389
        %v612 = vunpack.c.l.b16 %v390
        %v613 = vunpack.c.l.b16 %v391
        %v614 = vunpack.c.l.b16 %v392
        %v615 = vunpack.c.l.b16 %v393
        %v616 = vunpack.c.l.b16 %v394
        %v617 = vunpack.c.l.b16 %v395
        %v618 = vunpack.c.l.b16 %v396
        %v619 = vunpack.c.l.b16 %v397
        %v620 = vunpack.c.l.b16 %v398
        %v621 = vunpack.c.l.b16 %v399
        %v622 = vunpack.c.l.b16 %v400
        %v623 = vunpack.c.l.b16 %v401
        %v624 = vunpack.c.l.b16 %v402
        %v625 = vunpack.c.l.b16 %v403
        %v626 = vunpack.c.l.b16 %v404
        %v627 = vunpack.c.l.b16 %v405
        %v628 = vunpack.c.l.b16 %v406
        %v629 = vunpack.c.l.b16 %v407
        %v630 = vunpack.c.l.b16 %v408
        %v631 = vunpack.c.l.b16 %v409
        %v632 = vunpack.c.l.b16 %v410
        %v633 = vunpack.c.l.b16 %v411
        %v634 = vunpack.c.l.b16 %v412
        %v635 = vunpack.c.l.b16 %v413
        %v636 = vunpack.c.l.b16 %v414
        %v637 = vunpack.c.l.b16 %v415
        %v638 = vunpack.c.l.b16 %v416
        %v639 = vunpack.c.l.b16 %v417
        %v640 = vunpack.c.l.b16 %v418
        %v641 = vunpack.c.l.b16 %v419
        %v642 = vunpack.c.l.b16 %v420
        %v643 = vunpack.c.l.b16 %v421
        %v644 = vunpack.c.l.b16 %v422
        %v645 = vunpack.c.l.b16 %v423
        %v646 = vunpack.c.l.b16 %v424
        %v647 = vunpack.c.l.b16 %v425
        %v648 = vunpack.c.l.b16 %v426
        %v649 = vunpack.c.l.b16 %v427
        %v650 = vunpack.c.l.b16 %v428
        %v651 = vunpack.c.l.b16 %v429
        %v652 = vunpack.c.l.b16 %v430
        %v653 = vunpack.c.l.b16 %v431
        %v654 = vunpack.c.l.b16 %v432
        %v655 = vunpack.c.l.b16 %v433
        %v656 = vunpack.c.l.b16 %v434
        %v657 = vunpack.c.l.b16 %v435
        %v658 = vunpack.c.l.b16 %v436
        %v659 = vunpack.c.l.b16 %v437
        %v660 = vunpack.c.l.b16 %v438
        %v661 = vunpack.c.l.b16 %v439
        %v662 = vunpack.c.l.b16 %v440
        %v663 = vunpack.c.l.b16 %v441
        %v664 = vunpack.c.l.b16 %v442
        %v665 = vunpack.c.l.b16 %v443
        %v666 = vunpack.c.l.b16 %v444
        %v667 = vpack.c.b16 %v572, %v571
        %v668 = vpack.c.b16 %v574, %v573
        %v669 = vpack.c.b16 %v576, %v575
        %v670 = vpack.c.b16 %v578, %v577
        %v671 = vpack.c.b16 %v580, %v579
        %v672 = vpack.c.b16 %v582, %v581
        %v673 = vpack.c.b16 %v584, %v583
        %v674 = vpack.c.b16 %v586, %v585
        %v675 = vpack.c.b16 %v588, %v587
        %v676 = vpack.c.b16 %v590, %v589
        %v677 = vpack.c.b16 %v592, %v591
        %v678 = vpack.c.b16 %v594, %v593
        %v679 = vpack.c.b16 %v596, %v595
        %v680 = vpack.c.b16 %v598, %v597
        %v681 = vpack.c.b16 %v600, %v599
        %v682 = vpack.c.b16 %v602, %v601
        %v683 = vpack.c.b16 %v604, %v603
        %v684 = vpack.c.b16 %v606, %v605
        %v685 = vpack.c.b16 %v608, %v607
        %v686 = vpack.c.b16 %v610, %v609
        %v687 = vpack.c.b16 %v612, %v611
        %v688 = vpack.c.b16 %v614, %v613
        %v689 = vpack.c.b16 %v616, %v615
        %v690 = vpack.c.b16 %v618, %v617
        %v691 = vpack.c.b16 %v620, %v619
        %v692 = vpack.c.b16 %v622, %v621
        %v693 = vpack.c.b16 %v624, %v623
        %v694 = vpack.c.b16 %v626, %v625
        %v695 = vpack.c.b16 %v628, %v627
        %v696 = vpack.c.b16 %v630, %v629
        %v697 = vpack.c.b16 %v632, %v631
        %v698 = vpack.c.b16 %v634, %v633
        %v699 = vpack.c.b16 %v636, %v635
        %v700 = vpack.c.b16 %v638, %v637
        %v701 = vpack.c.b16 %v640, %v639
        %v702 = vpack.c.b16 %v642, %v641
        %v703 = vpack.c.b16 %v644, %v643
        %v704 = vpack.c.b16 %v646, %v645
        %v705 = vpack.c.b16 %v648, %v647
        %v706 = vpack.c.b16 %v650, %v649
        %v707 = vpack.c.b16 %v652, %v651
        %v708 = vpack.c.b16 %v654, %v653
        %v709 = vpack.c.b16 %v656, %v655
        %v710 = vpack.c.b16 %v658, %v657
        %v711 = vpack.c.b16 %v660, %v659
        %v712 = vpack.c.b16 %v662, %v661
        %v713 = vpack.c.b16 %v664, %v663
        %v714 = vpack.c.b16 %v666, %v665
        %763 = vmatprep.subr.bf16.mxu0 0
        %764 = vmatpush1.bf16.msra.mxu0 %v674
        %765 = vmatprep.subr.bf16.mxu0 0
        %766 = vmatpush1.bf16.msra.mxu0 %v673
        %767 = vmatprep.subr.bf16.mxu0 0
        %768 = vmatpush1.bf16.msra.mxu0 %v672
        %769 = vmatprep.subr.bf16.mxu0 0
        %770 = vmatpush1.bf16.msra.mxu0 %v671
        %771 = vmatprep.subr.bf16.mxu0 0
        %772 = vmatpush1.bf16.msra.mxu0 %v670
        %773 = vmatprep.subr.bf16.mxu0 0
        %774 = vmatpush1.bf16.msra.mxu0 %v669
        %775 = vmatprep.subr.bf16.mxu0 0
        %776 = vmatpush1.bf16.msra.mxu0 %v668
        %777 = vmatprep.subr.bf16.mxu0 0
        %778 = vmatpush1.bf16.msra.mxu0 %v667
        %779 = vmatprep.subr.bf16.mxu0 0
        %780 = vmatpush2.bf16.msra.mxu0 %v682
        %781 = vmatprep.subr.bf16.mxu0 0
        %782 = vmatpush2.bf16.msra.mxu0 %v681
        %783 = vmatprep.subr.bf16.mxu0 0
        %784 = vmatpush2.bf16.msra.mxu0 %v680
        %785 = vmatprep.subr.bf16.mxu0 0
        %786 = vmatpush2.bf16.msra.mxu0 %v679
        %787 = vmatprep.subr.bf16.mxu0 0
        %788 = vmatpush2.bf16.msra.mxu0 %v678
        %789 = vmatprep.subr.bf16.mxu0 0
        %790 = vmatpush2.bf16.msra.mxu0 %v677
        %791 = vmatprep.subr.bf16.mxu0 0
        %792 = vmatpush2.bf16.msra.mxu0 %v676
        %793 = vmatprep.subr.bf16.mxu0 0
        %794 = vmatpush2.bf16.msra.mxu0 %v675
        %795 = vmatprep.mubr.bf16.mxu0 %v464
        %796 = vmatmul.mubr.bf16.gmra.mxu0 %v463
        %v797 = vpop.f32.mrf.mxu0
        %v798 = vadd.f32 0.0, %v797
        %v799 = vpop.f32.mrf.mxu0
        %v800 = vpop.f32.mrf.mxu0
        %v801 = vadd.f32 0.0, %v800
        %v802 = vpop.f32.mrf.mxu0
        %803 = vdwg.mxu0
        %804 = vmatprep.subr.bf16.mxu0 0
        %805 = vmatpush1.bf16.msra.mxu0 %v690
        %806 = vmatprep.subr.bf16.mxu0 0
        %807 = vmatpush1.bf16.msra.mxu0 %v689
        %808 = vmatprep.subr.bf16.mxu0 0
        %809 = vmatpush1.bf16.msra.mxu0 %v688
        %810 = vmatprep.subr.bf16.mxu0 0
        %811 = vmatpush1.bf16.msra.mxu0 %v687
        %812 = vmatprep.subr.bf16.mxu0 0
        %813 = vmatpush1.bf16.msra.mxu0 %v686
        %814 = vmatprep.subr.bf16.mxu0 0
        %815 = vmatpush1.bf16.msra.mxu0 %v685
        %816 = vmatprep.subr.bf16.mxu0 0
        %817 = vmatpush1.bf16.msra.mxu0 %v684
        %818 = vmatprep.subr.bf16.mxu0 0
        %819 = vmatpush1.bf16.msra.mxu0 %v683
        %820 = vmatprep.subr.bf16.mxu0 0
        %821 = vmatpush2.bf16.msra.mxu0 %v698
        %822 = vmatprep.subr.bf16.mxu0 0
        %823 = vmatpush2.bf16.msra.mxu0 %v697
        %824 = vmatprep.subr.bf16.mxu0 0
        %825 = vmatpush2.bf16.msra.mxu0 %v696
        %826 = vmatprep.subr.bf16.mxu0 0
        %827 = vmatpush2.bf16.msra.mxu0 %v695
        %828 = vmatprep.subr.bf16.mxu0 0
        %829 = vmatpush2.bf16.msra.mxu0 %v694
        %830 = vmatprep.subr.bf16.mxu0 0
        %831 = vmatpush2.bf16.msra.mxu0 %v693
        %832 = vmatprep.subr.bf16.mxu0 0
        %833 = vmatpush2.bf16.msra.mxu0 %v692
        %834 = vmatprep.subr.bf16.mxu0 0
        %835 = vmatpush2.bf16.msra.mxu0 %v691
        %836 = vmatprep.mubr.bf16.mxu0 %v466
        %837 = vmatmul.mubr.bf16.gmra.mxu0 %v465
        %v838 = vpop.f32.mrf.mxu0
        %v839 = vadd.f32 %v798, %v838
        %v840 = vpop.f32.mrf.mxu0
        %v841 = vpop.f32.mrf.mxu0
        %v842 = vadd.f32 %v801, %v841
        %v843 = vpop.f32.mrf.mxu0
        %844 = vdwg.mxu0
        %845 = vmatprep.subr.bf16.mxu0 0
        %846 = vmatpush1.bf16.msra.mxu0 %v706
        %847 = vmatprep.subr.bf16.mxu0 0
        %848 = vmatpush1.bf16.msra.mxu0 %v705
        %849 = vmatprep.subr.bf16.mxu0 0
        %850 = vmatpush1.bf16.msra.mxu0 %v704
        %851 = vmatprep.subr.bf16.mxu0 0
        %852 = vmatpush1.bf16.msra.mxu0 %v703
        %853 = vmatprep.subr.bf16.mxu0 0
        %854 = vmatpush1.bf16.msra.mxu0 %v702
        %855 = vmatprep.subr.bf16.mxu0 0
        %856 = vmatpush1.bf16.msra.mxu0 %v701
        %857 = vmatprep.subr.bf16.mxu0 0
        %858 = vmatpush1.bf16.msra.mxu0 %v700
        %859 = vmatprep.subr.bf16.mxu0 0
        %860 = vmatpush1.bf16.msra.mxu0 %v699
        %861 = vmatprep.subr.bf16.mxu0 0
        %862 = vmatpush2.bf16.msra.mxu0 %v714
        %863 = vmatprep.subr.bf16.mxu0 0
        %864 = vmatpush2.bf16.msra.mxu0 %v713
        %865 = vmatprep.subr.bf16.mxu0 0
        %866 = vmatpush2.bf16.msra.mxu0 %v712
        %867 = vmatprep.subr.bf16.mxu0 0
        %868 = vmatpush2.bf16.msra.mxu0 %v711
        %869 = vmatprep.subr.bf16.mxu0 0
        %870 = vmatpush2.bf16.msra.mxu0 %v710
        %871 = vmatprep.subr.bf16.mxu0 0
        %872 = vmatpush2.bf16.msra.mxu0 %v709
        %873 = vmatprep.subr.bf16.mxu0 0
        %874 = vmatpush2.bf16.msra.mxu0 %v708
        %875 = vmatprep.subr.bf16.mxu0 0
        %876 = vmatpush2.bf16.msra.mxu0 %v707
        %877 = vmatprep.mubr.bf16.mxu0 %v468
        %878 = vmatmul.mubr.bf16.gmra.mxu0 %v467
        %v879 = vpop.f32.mrf.mxu0
        %v880 = vadd.f32 %v839, %v879
        %v881 = vpop.f32.mrf.mxu0
        %v882 = vpop.f32.mrf.mxu0
        %v883 = vadd.f32 %v842, %v882
        %v884 = vpop.f32.mrf.mxu0
        %885 = vdwg.mxu0
        %vm886 = vcmask 64512
        %v887 = vsel %vm886, %v880, -inf
        %v888 = vrot.slane %v887, 4
        %v889 = vmax.f32 %v887, %v888
        %v890 = vrot.slane %v889, 2
        %v891 = vmax.f32 %v889, %v890
        %v892 = vrot.slane %v891, 1
        %v893 = vmax.f32 %v891, %v892
        %v894 = vsel %vm886, %v883, -inf
        %v895 = vrot.slane %v894, 4
        %v896 = vmax.f32 %v894, %v895
        %v897 = vrot.slane %v896, 2
        %v898 = vmax.f32 %v896, %v897
        %v899 = vrot.slane %v898, 1
        %v900 = vmax.f32 %v898, %v899
        %v901 = vsub.f32 %v880, %v893
        %v902 = vsub.f32 %v883, %v900
        %v903 = vmul.f32 %v901, 1.442695
        %v904 = vpow.pop %v903
        %v905 = vmul.f32 %v902, 1.442695
        %v906 = vpow.pop %v905
        %v907 = vsel %vm886, %v904, 0.0
        %v908 = vrot.slane %v907, 4
        %v909 = vadd.f32 %v907, %v908
        %v910 = vrot.slane %v909, 2
        %v911 = vadd.f32 %v909, %v910
        %v912 = vrot.slane %v911, 1
        %v913 = vadd.f32 %v911, %v912
        %v914 = vsel %vm886, %v906, 0.0
        %v915 = vrot.slane %v914, 4
        %v916 = vadd.f32 %v914, %v915
        %v917 = vrot.slane %v916, 2
        %v918 = vadd.f32 %v916, %v917
        %v919 = vrot.slane %v918, 1
        %v920 = vadd.f32 %v918, %v919
        %v921 = vrcp.pop %v913
        %v922 = vrcp.pop %v920
        %v923 = vmul.f32 %v904, %v921
        %v924 = vmul.f32 %v906, %v922
        %v925 = vsel %vm886, %v923, 0.0
        %926 = vadd.xlane.f32.xlu0 %v925
        %v927 = vpop.xlane.xlu0 %926
        %v928 = vsel %vm886, %v924, 0.0
        %929 = vadd.xlane.f32.xlu0 %v928
        %v930 = vpop.xlane.xlu0 %929
        %v931 = vrcp.pop %v927
        %v932 = vrcp.pop %v930
        %v933 = vmul.f32 %v923, %v931
        %v934 = vmul.f32 %v924, %v932
        %v935 = vpack.c.bf16 %v934, %v933
        %v936 = vld [vmem:[%s2] sm:$0xff]
        %v937 = vld [vmem:[%s2 + $0x8] sm:$0xf]
        %v938 = vld [vmem:[%s3] sm:$0x7]
        %v940 = vlaneseq
        %v941 = vshrl.u32 %v940, 7
        %v942 = vsub.s32 0, %v941
        %v943 = vrot.slane %v938, %v942
        %v944 = vlaneseq
        %v945 = vshrl.u32 %v944, 7
        %v946 = vsub.s32 1, %v945
        %v947 = vrot.slane %v938, %v946
        %v948 = vlaneseq
        %v949 = vshrl.u32 %v948, 7
        %v950 = vsub.s32 2, %v949
        %v951 = vrot.slane %v938, %v950
        %v957 = vunpack.c.l.b16 %v936
        %v958 = vunpack.c.h.b16 %v936
        %v959 = vunpack.c.l.b16 %v937
        %v960 = vpack.c.b16 %v957, %v957
        %v961 = vpack.c.b16 %v958, %v958
        %v962 = vpack.c.b16 %v959, %v959
        %v964 = vsel %vm886, %v935, 0
        %vm966 = vcmask 1043456
        %v968 = vsel %vm966, %v960, 0
        %v971 = vsel %vm966, %v961, 0
        %v974 = vsel %vm966, %v962, 0
        %976 = vmatprep.subr.bf16.mxu0 0
        %977 = vmatpush1.bf16.msra.mxu0 0
        %978 = vmatprep.subr.bf16.mxu0 0
        %979 = vmatpush1.bf16.msra.mxu0 0
        %980 = vmatprep.subr.bf16.mxu0 0
        %981 = vmatpush1.bf16.msra.mxu0 0
        %982 = vmatprep.subr.bf16.mxu0 0
        %983 = vmatpush1.bf16.msra.mxu0 0
        %984 = vmatprep.subr.bf16.mxu0 0
        %985 = vmatpush1.bf16.msra.mxu0 0
        %986 = vmatprep.subr.bf16.mxu0 0
        %987 = vmatpush1.bf16.msra.mxu0 0
        %988 = vmatprep.subr.bf16.mxu0 0
        %989 = vmatpush1.bf16.msra.mxu0 0
        %990 = vmatprep.subr.bf16.mxu0 %v971
        %991 = vmatpush1.bf16.msra.mxu0 %v968
        %992 = vmatprep.subr.bf16.mxu0 0
        %993 = vmatpush2.bf16.msra.mxu0 0
        %994 = vmatprep.subr.bf16.mxu0 0
        %995 = vmatpush2.bf16.msra.mxu0 0
        %996 = vmatprep.subr.bf16.mxu0 0
        %997 = vmatpush2.bf16.msra.mxu0 0
        %998 = vmatprep.subr.bf16.mxu0 0
        %999 = vmatpush2.bf16.msra.mxu0 0
        %1000 = vmatprep.subr.bf16.mxu0 0
        %1001 = vmatpush2.bf16.msra.mxu0 0
        %1002 = vmatprep.subr.bf16.mxu0 0
        %1003 = vmatpush2.bf16.msra.mxu0 0
        %1004 = vmatprep.subr.bf16.mxu0 0
        %1005 = vmatpush2.bf16.msra.mxu0 0
        %1006 = vmatprep.subr.bf16.mxu0 0
        %1007 = vmatpush2.bf16.msra.mxu0 0
        %1008 = vmatprep.mubr.bf16.mxu0 0
        %1009 = vmatmul.mubr.bf16.gmra.mxu0 %v964
        %v1010 = vpop.f32.mrf.mxu0
        %v1011 = vadd.f32 %v943, %v1010
        %v1012 = vpop.f32.mrf.mxu0
        %v1013 = vadd.f32 %v947, %v1012
        %v1014 = vpop.f32.mrf.mxu0
        %v1015 = vadd.f32 %v943, %v1014
        %v1016 = vpop.f32.mrf.mxu0
        %v1017 = vadd.f32 %v947, %v1016
        %1018 = vdwg.mxu0
        %1019 = vmatprep.subr.bf16.mxu0 0
        %1020 = vmatpush1.bf16.msra.mxu0 0
        %1021 = vmatprep.subr.bf16.mxu0 0
        %1022 = vmatpush1.bf16.msra.mxu0 0
        %1023 = vmatprep.subr.bf16.mxu0 0
        %1024 = vmatpush1.bf16.msra.mxu0 0
        %1025 = vmatprep.subr.bf16.mxu0 0
        %1026 = vmatpush1.bf16.msra.mxu0 0
        %1027 = vmatprep.subr.bf16.mxu0 0
        %1028 = vmatpush1.bf16.msra.mxu0 0
        %1029 = vmatprep.subr.bf16.mxu0 0
        %1030 = vmatpush1.bf16.msra.mxu0 0
        %1031 = vmatprep.subr.bf16.mxu0 0
        %1032 = vmatpush1.bf16.msra.mxu0 0
        %1033 = vmatprep.subr.bf16.mxu0 0
        %1034 = vmatpush1.bf16.msra.mxu0 %v974
        %1035 = vmatprep.subr.bf16.mxu0 0
        %1036 = vmatpush2.bf16.msra.mxu0 0
        %1037 = vmatprep.subr.bf16.mxu0 0
        %1038 = vmatpush2.bf16.msra.mxu0 0
        %1039 = vmatprep.subr.bf16.mxu0 0
        %1040 = vmatpush2.bf16.msra.mxu0 0
        %1041 = vmatprep.subr.bf16.mxu0 0
        %1042 = vmatpush2.bf16.msra.mxu0 0
        %1043 = vmatprep.subr.bf16.mxu0 0
        %1044 = vmatpush2.bf16.msra.mxu0 0
        %1045 = vmatprep.subr.bf16.mxu0 0
        %1046 = vmatpush2.bf16.msra.mxu0 0
        %1047 = vmatprep.subr.bf16.mxu0 0
        %1048 = vmatpush2.bf16.msra.mxu0 0
        %1049 = vmatprep.subr.bf16.mxu0 0
        %1050 = vmatpush2.bf16.msra.mxu0 0
        %1051 = vmatprep.mubr.bf16.mxu0 0
        %1052 = vmatmul.mubr.bf16.gmra.mxu0 %v964
        %v1053 = vpop.f32.mrf.mxu0
        %v1054 = vadd.f32 %v951, %v1053
        %v1055 = vpop.f32.mrf.mxu0
        %v1056 = vpop.f32.mrf.mxu0
        %v1057 = vadd.f32 %v951, %v1056
        %v1058 = vpop.f32.mrf.mxu0
        %1059 = vdwg.mxu0
        %v1060 = vmax.f32 %v1011, 0.0
        %v1061 = vmax.f32 %v1013, 0.0
        %v1062 = vmax.f32 %v1054, 0.0
        %v1063 = vmax.f32 %v1015, 0.0
        %v1064 = vmax.f32 %v1017, 0.0
        %v1065 = vmax.f32 %v1057, 0.0
        %v1066 = vpack.c.bf16 %v1063, %v1060
        %v1067 = vpack.c.bf16 %v1064, %v1061
        %v1068 = vpack.c.bf16 %v1065, %v1062
        %v1069 = vld [vmem:[%s4] sm:$0xff]
        %v1070 = vld [vmem:[%s4 + $0x8] sm:$0xff]
        %v1071 = vld [vmem:[%s4 + $0x10] sm:$0xff]
        %v1072 = vld [vmem:[%s4 + $0x18] sm:$0xff]
        %v1073 = vld [vmem:[%s4 + $0x20] sm:$0xff]
        %v1074 = vld [vmem:[%s4 + $0x28] sm:$0xff]
        %v1075 = vld [vmem:[%s4 + $0x30] sm:$0xff]
        %v1076 = vld [vmem:[%s4 + $0x38] sm:$0xff]
        %v1077 = vld [vmem:[%s4 + $0x40] sm:$0xff]
        %v1078 = vld [vmem:[%s4 + $0x48] sm:$0xff]
        %v1079 = vld [vmem:[%s4 + $0x50] sm:$0xff]
        %v1080 = vld [vmem:[%s4 + $0x58] sm:$0xff]
        %v1081 = vld [vmem:[%s4 + $0x60] sm:$0xff]
        %v1082 = vld [vmem:[%s4 + $0x68] sm:$0xff]
        %v1083 = vld [vmem:[%s4 + $0x70] sm:$0xff]
        %v1084 = vld [vmem:[%s4 + $0x78] sm:$0xff]
        %v1085 = vld [vmem:[%s4 + $0x80] sm:$0xff]
        %v1086 = vld [vmem:[%s4 + $0x88] sm:$0xff]
        %v1087 = vld [vmem:[%s4 + $0x90] sm:$0xff]
        %v1088 = vld [vmem:[%s4 + $0x98] sm:$0xff]
        %v1089 = vld [vmem:[%s4 + $0xa0] sm:$0xff]
        %v1090 = vld [vmem:[%s4 + $0xa8] sm:$0xff]
        %v1091 = vld [vmem:[%s4 + $0xb0] sm:$0xff]
        %v1092 = vld [vmem:[%s4 + $0xb8] sm:$0xff]
        %v1093 = vld [vmem:[%s4 + $0xc0] sm:$0xff]
        %v1094 = vld [vmem:[%s4 + $0xc8] sm:$0xff]
        %v1095 = vld [vmem:[%s4 + $0xd0] sm:$0xff]
        %v1096 = vld [vmem:[%s4 + $0xd8] sm:$0xff]
        %v1097 = vld [vmem:[%s4 + $0xe0] sm:$0xff]
        %v1098 = vld [vmem:[%s4 + $0xe8] sm:$0xff]
        %v1099 = vld [vmem:[%s4 + $0xf0] sm:$0xff]
        %v1100 = vld [vmem:[%s4 + $0xf8] sm:$0xff]
        %v1101 = vld [vmem:[%s4 + $0x100] sm:$0xff]
        %v1102 = vld [vmem:[%s4 + $0x108] sm:$0xff]
        %v1103 = vld [vmem:[%s4 + $0x110] sm:$0xff]
        %v1104 = vld [vmem:[%s4 + $0x118] sm:$0xff]
        %v1105 = vld [vmem:[%s4 + $0x120] sm:$0xff]
        %v1106 = vld [vmem:[%s4 + $0x128] sm:$0xff]
        %v1107 = vld [vmem:[%s4 + $0x130] sm:$0xff]
        %v1108 = vld [vmem:[%s4 + $0x138] sm:$0xff]
        %v1109 = vld [vmem:[%s4 + $0x140] sm:$0xff]
        %v1110 = vld [vmem:[%s4 + $0x148] sm:$0xff]
        %v1111 = vld [vmem:[%s4 + $0x150] sm:$0xff]
        %v1112 = vld [vmem:[%s4 + $0x158] sm:$0xff]
        %v1113 = vld [vmem:[%s4 + $0x160] sm:$0xff]
        %v1114 = vld [vmem:[%s4 + $0x168] sm:$0xff]
        %v1115 = vld [vmem:[%s4 + $0x170] sm:$0xff]
        %v1116 = vld [vmem:[%s4 + $0x178] sm:$0xff]
        %v1117 = vld [vmem:[%s5] sm:$0x3]
        %v1119 = vlaneseq
        %v1120 = vshrl.u32 %v1119, 7
        %v1121 = vsub.s32 0, %v1120
        %v1122 = vrot.slane %v1117, %v1121
        %v1123 = vlaneseq
        %v1124 = vshrl.u32 %v1123, 7
        %v1125 = vsub.s32 1, %v1124
        %v1126 = vrot.slane %v1117, %v1125
        %v1177 = vunpack.c.l.b16 %v1069
        %v1178 = vunpack.c.h.b16 %v1069
        %v1179 = vunpack.c.l.b16 %v1070
        %v1180 = vunpack.c.h.b16 %v1070
        %v1181 = vunpack.c.l.b16 %v1071
        %v1182 = vunpack.c.h.b16 %v1071
        %v1183 = vunpack.c.l.b16 %v1072
        %v1184 = vunpack.c.h.b16 %v1072
        %v1185 = vunpack.c.l.b16 %v1073
        %v1186 = vunpack.c.h.b16 %v1073
        %v1187 = vunpack.c.l.b16 %v1074
        %v1188 = vunpack.c.h.b16 %v1074
        %v1189 = vunpack.c.l.b16 %v1075
        %v1190 = vunpack.c.h.b16 %v1075
        %v1191 = vunpack.c.l.b16 %v1076
        %v1192 = vunpack.c.h.b16 %v1076
        %v1193 = vunpack.c.l.b16 %v1077
        %v1194 = vunpack.c.h.b16 %v1077
        %v1195 = vunpack.c.l.b16 %v1078
        %v1196 = vunpack.c.h.b16 %v1078
        %v1197 = vunpack.c.l.b16 %v1079
        %v1198 = vunpack.c.h.b16 %v1079
        %v1199 = vunpack.c.l.b16 %v1080
        %v1200 = vunpack.c.h.b16 %v1080
        %v1201 = vunpack.c.l.b16 %v1081
        %v1202 = vunpack.c.h.b16 %v1081
        %v1203 = vunpack.c.l.b16 %v1082
        %v1204 = vunpack.c.h.b16 %v1082
        %v1205 = vunpack.c.l.b16 %v1083
        %v1206 = vunpack.c.h.b16 %v1083
        %v1207 = vunpack.c.l.b16 %v1084
        %v1208 = vunpack.c.h.b16 %v1084
        %v1209 = vunpack.c.l.b16 %v1085
        %v1210 = vunpack.c.h.b16 %v1085
        %v1211 = vunpack.c.l.b16 %v1086
        %v1212 = vunpack.c.h.b16 %v1086
        %v1213 = vunpack.c.l.b16 %v1087
        %v1214 = vunpack.c.h.b16 %v1087
        %v1215 = vunpack.c.l.b16 %v1088
        %v1216 = vunpack.c.h.b16 %v1088
        %v1217 = vunpack.c.l.b16 %v1089
        %v1218 = vunpack.c.h.b16 %v1089
        %v1219 = vunpack.c.l.b16 %v1090
        %v1220 = vunpack.c.h.b16 %v1090
        %v1221 = vunpack.c.l.b16 %v1091
        %v1222 = vunpack.c.h.b16 %v1091
        %v1223 = vunpack.c.l.b16 %v1092
        %v1224 = vunpack.c.h.b16 %v1092
        %v1225 = vunpack.c.l.b16 %v1093
        %v1226 = vunpack.c.h.b16 %v1093
        %v1227 = vunpack.c.l.b16 %v1094
        %v1228 = vunpack.c.h.b16 %v1094
        %v1229 = vunpack.c.l.b16 %v1095
        %v1230 = vunpack.c.h.b16 %v1095
        %v1231 = vunpack.c.l.b16 %v1096
        %v1232 = vunpack.c.h.b16 %v1096
        %v1233 = vunpack.c.l.b16 %v1097
        %v1234 = vunpack.c.h.b16 %v1097
        %v1235 = vunpack.c.l.b16 %v1098
        %v1236 = vunpack.c.h.b16 %v1098
        %v1237 = vunpack.c.l.b16 %v1099
        %v1238 = vunpack.c.h.b16 %v1099
        %v1239 = vunpack.c.l.b16 %v1100
        %v1240 = vunpack.c.h.b16 %v1100
        %v1241 = vunpack.c.l.b16 %v1101
        %v1242 = vunpack.c.h.b16 %v1101
        %v1243 = vunpack.c.l.b16 %v1102
        %v1244 = vunpack.c.h.b16 %v1102
        %v1245 = vunpack.c.l.b16 %v1103
        %v1246 = vunpack.c.h.b16 %v1103
        %v1247 = vunpack.c.l.b16 %v1104
        %v1248 = vunpack.c.h.b16 %v1104
        %v1249 = vunpack.c.l.b16 %v1105
        %v1250 = vunpack.c.h.b16 %v1105
        %v1251 = vunpack.c.l.b16 %v1106
        %v1252 = vunpack.c.h.b16 %v1106
        %v1253 = vunpack.c.l.b16 %v1107
        %v1254 = vunpack.c.h.b16 %v1107
        %v1255 = vunpack.c.l.b16 %v1108
        %v1256 = vunpack.c.h.b16 %v1108
        %v1257 = vunpack.c.l.b16 %v1109
        %v1258 = vunpack.c.h.b16 %v1109
        %v1259 = vunpack.c.l.b16 %v1110
        %v1260 = vunpack.c.h.b16 %v1110
        %v1261 = vunpack.c.l.b16 %v1111
        %v1262 = vunpack.c.h.b16 %v1111
        %v1263 = vunpack.c.l.b16 %v1112
        %v1264 = vunpack.c.h.b16 %v1112
        %v1265 = vunpack.c.l.b16 %v1113
        %v1266 = vunpack.c.h.b16 %v1113
        %v1267 = vunpack.c.l.b16 %v1114
        %v1268 = vunpack.c.h.b16 %v1114
        %v1269 = vunpack.c.l.b16 %v1115
        %v1270 = vunpack.c.h.b16 %v1115
        %v1271 = vunpack.c.l.b16 %v1116
        %v1272 = vunpack.c.h.b16 %v1116
        %v1273 = vpack.c.b16 %v1179, %v1177
        %v1274 = vpack.c.b16 %v1180, %v1178
        %v1275 = vpack.c.b16 %v1183, %v1181
        %v1276 = vpack.c.b16 %v1184, %v1182
        %v1277 = vpack.c.b16 %v1187, %v1185
        %v1278 = vpack.c.b16 %v1188, %v1186
        %v1279 = vpack.c.b16 %v1191, %v1189
        %v1280 = vpack.c.b16 %v1192, %v1190
        %v1281 = vpack.c.b16 %v1195, %v1193
        %v1282 = vpack.c.b16 %v1196, %v1194
        %v1283 = vpack.c.b16 %v1199, %v1197
        %v1284 = vpack.c.b16 %v1200, %v1198
        %v1285 = vpack.c.b16 %v1203, %v1201
        %v1286 = vpack.c.b16 %v1204, %v1202
        %v1287 = vpack.c.b16 %v1207, %v1205
        %v1288 = vpack.c.b16 %v1208, %v1206
        %v1289 = vpack.c.b16 %v1211, %v1209
        %v1290 = vpack.c.b16 %v1212, %v1210
        %v1291 = vpack.c.b16 %v1215, %v1213
        %v1292 = vpack.c.b16 %v1216, %v1214
        %v1293 = vpack.c.b16 %v1219, %v1217
        %v1294 = vpack.c.b16 %v1220, %v1218
        %v1295 = vpack.c.b16 %v1223, %v1221
        %v1296 = vpack.c.b16 %v1224, %v1222
        %v1297 = vpack.c.b16 %v1227, %v1225
        %v1298 = vpack.c.b16 %v1228, %v1226
        %v1299 = vpack.c.b16 %v1231, %v1229
        %v1300 = vpack.c.b16 %v1232, %v1230
        %v1301 = vpack.c.b16 %v1235, %v1233
        %v1302 = vpack.c.b16 %v1236, %v1234
        %v1303 = vpack.c.b16 %v1239, %v1237
        %v1304 = vpack.c.b16 %v1240, %v1238
        %v1305 = vpack.c.b16 %v1243, %v1241
        %v1306 = vpack.c.b16 %v1244, %v1242
        %v1307 = vpack.c.b16 %v1247, %v1245
        %v1308 = vpack.c.b16 %v1248, %v1246
        %v1309 = vpack.c.b16 %v1251, %v1249
        %v1310 = vpack.c.b16 %v1252, %v1250
        %v1311 = vpack.c.b16 %v1255, %v1253
        %v1312 = vpack.c.b16 %v1256, %v1254
        %v1313 = vpack.c.b16 %v1259, %v1257
        %v1314 = vpack.c.b16 %v1260, %v1258
        %v1315 = vpack.c.b16 %v1263, %v1261
        %v1316 = vpack.c.b16 %v1264, %v1262
        %v1317 = vpack.c.b16 %v1267, %v1265
        %v1318 = vpack.c.b16 %v1268, %v1266
        %v1319 = vpack.c.b16 %v1271, %v1269
        %v1320 = vpack.c.b16 %v1272, %v1270
        %1369 = vmatprep.subr.bf16.mxu0 %v1288
        %1370 = vmatpush1.bf16.msra.mxu0 %v1287
        %1371 = vmatprep.subr.bf16.mxu0 %v1286
        %1372 = vmatpush1.bf16.msra.mxu0 %v1285
        %1373 = vmatprep.subr.bf16.mxu0 %v1284
        %1374 = vmatpush1.bf16.msra.mxu0 %v1283
        %1375 = vmatprep.subr.bf16.mxu0 %v1282
        %1376 = vmatpush1.bf16.msra.mxu0 %v1281
        %1377 = vmatprep.subr.bf16.mxu0 %v1280
        %1378 = vmatpush1.bf16.msra.mxu0 %v1279
        %1379 = vmatprep.subr.bf16.mxu0 %v1278
        %1380 = vmatpush1.bf16.msra.mxu0 %v1277
        %1381 = vmatprep.subr.bf16.mxu0 %v1276
        %1382 = vmatpush1.bf16.msra.mxu0 %v1275
        %1383 = vmatprep.subr.bf16.mxu0 %v1274
        %1384 = vmatpush1.bf16.msra.mxu0 %v1273
        %1385 = vmatprep.subr.bf16.mxu0 %v1304
        %1386 = vmatpush2.bf16.msra.mxu0 %v1303
        %1387 = vmatprep.subr.bf16.mxu0 %v1302
        %1388 = vmatpush2.bf16.msra.mxu0 %v1301
        %1389 = vmatprep.subr.bf16.mxu0 %v1300
        %1390 = vmatpush2.bf16.msra.mxu0 %v1299
        %1391 = vmatprep.subr.bf16.mxu0 %v1298
        %1392 = vmatpush2.bf16.msra.mxu0 %v1297
        %1393 = vmatprep.subr.bf16.mxu0 %v1296
        %1394 = vmatpush2.bf16.msra.mxu0 %v1295
        %1395 = vmatprep.subr.bf16.mxu0 %v1294
        %1396 = vmatpush2.bf16.msra.mxu0 %v1293
        %1397 = vmatprep.subr.bf16.mxu0 %v1292
        %1398 = vmatpush2.bf16.msra.mxu0 %v1291
        %1399 = vmatprep.subr.bf16.mxu0 %v1290
        %1400 = vmatpush2.bf16.msra.mxu0 %v1289
        %1401 = vmatprep.mubr.bf16.mxu0 %v1067
        %1402 = vmatmul.mubr.bf16.gmra.mxu0 %v1066
        %v1403 = vpop.f32.mrf.mxu0
        %v1404 = vadd.f32 %v1122, %v1403
        %v1405 = vpop.f32.mrf.mxu0
        %v1406 = vadd.f32 %v1126, %v1405
        %v1407 = vpop.f32.mrf.mxu0
        %v1408 = vadd.f32 %v1122, %v1407
        %v1409 = vpop.f32.mrf.mxu0
        %v1410 = vadd.f32 %v1126, %v1409
        %1411 = vdwg.mxu0
        %1412 = vmatprep.subr.bf16.mxu0 %v1320
        %1413 = vmatpush1.bf16.msra.mxu0 %v1319
        %1414 = vmatprep.subr.bf16.mxu0 %v1318
        %1415 = vmatpush1.bf16.msra.mxu0 %v1317
        %1416 = vmatprep.subr.bf16.mxu0 %v1316
        %1417 = vmatpush1.bf16.msra.mxu0 %v1315
        %1418 = vmatprep.subr.bf16.mxu0 %v1314
        %1419 = vmatpush1.bf16.msra.mxu0 %v1313
        %1420 = vmatprep.subr.bf16.mxu0 %v1312
        %1421 = vmatpush1.bf16.msra.mxu0 %v1311
        %1422 = vmatprep.subr.bf16.mxu0 %v1310
        %1423 = vmatpush1.bf16.msra.mxu0 %v1309
        %1424 = vmatprep.subr.bf16.mxu0 %v1308
        %1425 = vmatpush1.bf16.msra.mxu0 %v1307
        %1426 = vmatprep.subr.bf16.mxu0 %v1306
        %1427 = vmatpush1.bf16.msra.mxu0 %v1305
        %1428 = vmatprep.subr.bf16.mxu0 0
        %1429 = vmatpush2.bf16.msra.mxu0 0
        %1430 = vmatprep.subr.bf16.mxu0 0
        %1431 = vmatpush2.bf16.msra.mxu0 0
        %1432 = vmatprep.subr.bf16.mxu0 0
        %1433 = vmatpush2.bf16.msra.mxu0 0
        %1434 = vmatprep.subr.bf16.mxu0 0
        %1435 = vmatpush2.bf16.msra.mxu0 0
        %1436 = vmatprep.subr.bf16.mxu0 0
        %1437 = vmatpush2.bf16.msra.mxu0 0
        %1438 = vmatprep.subr.bf16.mxu0 0
        %1439 = vmatpush2.bf16.msra.mxu0 0
        %1440 = vmatprep.subr.bf16.mxu0 0
        %1441 = vmatpush2.bf16.msra.mxu0 0
        %1442 = vmatprep.subr.bf16.mxu0 0
        %1443 = vmatpush2.bf16.msra.mxu0 0
        %1444 = vmatprep.mubr.bf16.mxu0 0
        %1445 = vmatmul.mubr.bf16.gmra.mxu0 %v1068
        %v1446 = vpop.f32.mrf.mxu0
        %v1447 = vadd.f32 %v1404, %v1446
        %v1448 = vpop.f32.mrf.mxu0
        %v1449 = vadd.f32 %v1406, %v1448
        %v1450 = vpop.f32.mrf.mxu0
        %v1451 = vadd.f32 %v1408, %v1450
        %v1452 = vpop.f32.mrf.mxu0
        %v1453 = vadd.f32 %v1410, %v1452
        %1454 = vdwg.mxu0
        %v1455 = vmax.f32 %v1447, 0.0
        %v1456 = vmax.f32 %v1449, 0.0
        %v1457 = vmax.f32 %v1451, 0.0
        %v1458 = vmax.f32 %v1453, 0.0
        %v1459 = vpack.c.bf16 %v1457, %v1455
        %v1460 = vpack.c.bf16 %v1458, %v1456
        %v1461 = vld [vmem:[#allocation5] sm:$0xf]
        %v1462 = vld [vmem:[#allocation5 + $0x4] sm:$0xf]
        %v1463 = vld [vmem:[#allocation5 + $0x8] sm:$0xf]
        %v1464 = vld [vmem:[#allocation5 + $0xc] sm:$0xf]
        %v1465 = vld [vmem:[#allocation5 + $0x10] sm:$0xf]
        %v1466 = vld [vmem:[#allocation5 + $0x14] sm:$0xf]
        %v1467 = vld [vmem:[#allocation5 + $0x18] sm:$0xf]
        %v1468 = vld [vmem:[#allocation5 + $0x1c] sm:$0xf]
        %v1469 = vld [vmem:[#allocation5 + $0x20] sm:$0xf]
        %v1470 = vld [vmem:[#allocation5 + $0x24] sm:$0xf]
        %v1471 = vld [vmem:[#allocation5 + $0x28] sm:$0xf]
        %v1472 = vld [vmem:[#allocation5 + $0x2c] sm:$0xf]
        %v1473 = vld [vmem:[#allocation5 + $0x30] sm:$0xf]
        %v1474 = vld [vmem:[#allocation5 + $0x34] sm:$0xf]
        %v1475 = vld [vmem:[#allocation5 + $0x38] sm:$0xf]
        %v1476 = vld [vmem:[#allocation5 + $0x3c] sm:$0xf]
        %v1477 = vld [vmem:[#allocation5 + $0x40] sm:$0xf]
        %v1478 = vld [vmem:[#allocation5 + $0x44] sm:$0xf]
        %v1479 = vld [vmem:[#allocation5 + $0x48] sm:$0xf]
        %v1480 = vld [vmem:[#allocation5 + $0x4c] sm:$0xf]
        %v1481 = vld [vmem:[#allocation5 + $0x50] sm:$0xf]
        %v1482 = vld [vmem:[#allocation5 + $0x54] sm:$0xf]
        %v1483 = vld [vmem:[#allocation5 + $0x58] sm:$0xf]
        %v1484 = vld [vmem:[#allocation5 + $0x5c] sm:$0xf]
        %v1485 = vld [vmem:[#allocation5 + $0x60] sm:$0xf]
        %v1486 = vld [vmem:[#allocation5 + $0x64] sm:$0xf]
        %v1487 = vld [vmem:[#allocation5 + $0x68] sm:$0xf]
        %v1488 = vld [vmem:[#allocation5 + $0x6c] sm:$0xf]
        %v1489 = vld [vmem:[#allocation5 + $0x70] sm:$0xf]
        %v1490 = vld [vmem:[#allocation5 + $0x74] sm:$0xf]
        %v1491 = vld [vmem:[#allocation5 + $0x78] sm:$0xf]
        %v1492 = vld [vmem:[#allocation5 + $0x7c] sm:$0xf]
        %v1493 = vld [vmem:[%s7] sm:$0x1]
        %v1495 = vlaneseq
        %v1496 = vshrl.u32 %v1495, 7
        %v1497 = vsub.s32 0, %v1496
        %v1498 = vrot.slane %v1493, %v1497
        %v1532 = vunpack.c.l.b16 %v1461
        %v1533 = vunpack.c.l.b16 %v1462
        %v1534 = vunpack.c.l.b16 %v1463
        %v1535 = vunpack.c.l.b16 %v1464
        %v1536 = vunpack.c.l.b16 %v1465
        %v1537 = vunpack.c.l.b16 %v1466
        %v1538 = vunpack.c.l.b16 %v1467
        %v1539 = vunpack.c.l.b16 %v1468
        %v1540 = vunpack.c.l.b16 %v1469
        %v1541 = vunpack.c.l.b16 %v1470
        %v1542 = vunpack.c.l.b16 %v1471
        %v1543 = vunpack.c.l.b16 %v1472
        %v1544 = vunpack.c.l.b16 %v1473
        %v1545 = vunpack.c.l.b16 %v1474
        %v1546 = vunpack.c.l.b16 %v1475
        %v1547 = vunpack.c.l.b16 %v1476
        %v1548 = vunpack.c.l.b16 %v1477
        %v1549 = vunpack.c.l.b16 %v1478
        %v1550 = vunpack.c.l.b16 %v1479
        %v1551 = vunpack.c.l.b16 %v1480
        %v1552 = vunpack.c.l.b16 %v1481
        %v1553 = vunpack.c.l.b16 %v1482
        %v1554 = vunpack.c.l.b16 %v1483
        %v1555 = vunpack.c.l.b16 %v1484
        %v1556 = vunpack.c.l.b16 %v1485
        %v1557 = vunpack.c.l.b16 %v1486
        %v1558 = vunpack.c.l.b16 %v1487
        %v1559 = vunpack.c.l.b16 %v1488
        %v1560 = vunpack.c.l.b16 %v1489
        %v1561 = vunpack.c.l.b16 %v1490
        %v1562 = vunpack.c.l.b16 %v1491
        %v1563 = vunpack.c.l.b16 %v1492
        %v1564 = vpack.c.b16 %v1533, %v1532
        %v1565 = vpack.c.b16 %v1535, %v1534
        %v1566 = vpack.c.b16 %v1537, %v1536
        %v1567 = vpack.c.b16 %v1539, %v1538
        %v1568 = vpack.c.b16 %v1541, %v1540
        %v1569 = vpack.c.b16 %v1543, %v1542
        %v1570 = vpack.c.b16 %v1545, %v1544
        %v1571 = vpack.c.b16 %v1547, %v1546
        %v1572 = vpack.c.b16 %v1549, %v1548
        %v1573 = vpack.c.b16 %v1551, %v1550
        %v1574 = vpack.c.b16 %v1553, %v1552
        %v1575 = vpack.c.b16 %v1555, %v1554
        %v1576 = vpack.c.b16 %v1557, %v1556
        %v1577 = vpack.c.b16 %v1559, %v1558
        %v1578 = vpack.c.b16 %v1561, %v1560
        %v1579 = vpack.c.b16 %v1563, %v1562
        %1596 = vmatprep.subr.bf16.mxu0 0
        %1597 = vmatpush1.bf16.msra.mxu0 %v1571
        %1598 = vmatprep.subr.bf16.mxu0 0
        %1599 = vmatpush1.bf16.msra.mxu0 %v1570
        %1600 = vmatprep.subr.bf16.mxu0 0
        %1601 = vmatpush1.bf16.msra.mxu0 %v1569
        %1602 = vmatprep.subr.bf16.mxu0 0
        %1603 = vmatpush1.bf16.msra.mxu0 %v1568
        %1604 = vmatprep.subr.bf16.mxu0 0
        %1605 = vmatpush1.bf16.msra.mxu0 %v1567
        %1606 = vmatprep.subr.bf16.mxu0 0
        %1607 = vmatpush1.bf16.msra.mxu0 %v1566
        %1608 = vmatprep.subr.bf16.mxu0 0
        %1609 = vmatpush1.bf16.msra.mxu0 %v1565
        %1610 = vmatprep.subr.bf16.mxu0 0
        %1611 = vmatpush1.bf16.msra.mxu0 %v1564
        %1612 = vmatprep.subr.bf16.mxu0 0
        %1613 = vmatpush2.bf16.msra.mxu0 %v1579
        %1614 = vmatprep.subr.bf16.mxu0 0
        %1615 = vmatpush2.bf16.msra.mxu0 %v1578
        %1616 = vmatprep.subr.bf16.mxu0 0
        %1617 = vmatpush2.bf16.msra.mxu0 %v1577
        %1618 = vmatprep.subr.bf16.mxu0 0
        %1619 = vmatpush2.bf16.msra.mxu0 %v1576
        %1620 = vmatprep.subr.bf16.mxu0 0
        %1621 = vmatpush2.bf16.msra.mxu0 %v1575
        %1622 = vmatprep.subr.bf16.mxu0 0
        %1623 = vmatpush2.bf16.msra.mxu0 %v1574
        %1624 = vmatprep.subr.bf16.mxu0 0
        %1625 = vmatpush2.bf16.msra.mxu0 %v1573
        %1626 = vmatprep.subr.bf16.mxu0 0
        %1627 = vmatpush2.bf16.msra.mxu0 %v1572
        %1628 = vmatprep.mubr.bf16.mxu0 %v1460
        %1629 = vmatmul.mubr.bf16.gmra.mxu0 %v1459
        %v1630 = vpop.f32.mrf.mxu0
        %v1631 = vadd.f32 %v1498, %v1630
        %v1632 = vpop.f32.mrf.mxu0
        %v1633 = vpop.f32.mrf.mxu0
        %v1634 = vadd.f32 %v1498, %v1633
        %v1635 = vpop.f32.mrf.mxu0
        %1636 = vdwg.mxu0
        %v1637 = vmax.f32 %v1631, 0.0
        %v1638 = vmax.f32 %v1634, 0.0
        %1639 = vst [vmem:[%s339] sm:$0xff] %v1637
        %1640 = vst [vmem:[%s339 + $0x8] sm:$0xff] %v1638
        %s1641 = sand.u32 %s207, 1
        %s1642 = scalar_lea.sflag [#allocation4], %s1641
        %s1643 = sand.u32 %s207, 1
        %s1644 = smul.addr %s1643, 16
        %s1645 = scalar_lea.vmem [#allocation7], %s1644
        // Predicated region
        $region61: #{tpu_custom_call.1} parent=51 // pred_check
          %p1646 = pneg %p217
        $region62: #{tpu_custom_call.1} parent=51 // pred_check_branch
          %1648 = sbr.rel (%p1646) target = $region64
        $region63: #{tpu_custom_call.1} parent=51 // pred_region
          %s1649 = smul.u32 2, %s26
          %s1651 = ssub.s32 256, 256
          %1652 = vsyncadd %s1642, %s1651
          %s1653 = smul.addr %s1649, 128
          %s1654 = scalar_lea.hbm %s8, %s1653
          %s1655 = sshll.u32 %s1645, 4
          %s1656 = int_to_ptr.vmem [resolvable:$true] %s1655
          %1661 = dma.vmem_to_hbm [thread:$0]  %s1656, 256, %s1654, %s1642, 128, 128, 8
        $region64: #{tpu_custom_call.1} parent=51 // pred_fallthru
          _
      $region52: #{tpu_custom_call.1} parent=5 // pred_fallthru
        _
      %p1662 = scmp.le.s32.totalorder 2, %s21
      // Predicated region
      $region65: #{tpu_custom_call.1} parent=5 // pred_check
        %p1663 = pneg %p1662
      $region66: #{tpu_custom_call.1} parent=5 // pred_check_branch
        %1665 = sbr.rel (%p1663) target = $region68
      $region67: #{tpu_custom_call.1} parent=5 // pred_region
        %s1666 = ssub.s32 %s21, 2
        // Predicated region
        $region69: #{tpu_custom_call.1} parent=67 // pred_check
          %p1667 = pneg %p223
        $region70: #{tpu_custom_call.1} parent=67 // pred_check_branch
          %1669 = sbr.rel (%p1667) target = $region72
        $region71: #{tpu_custom_call.1} parent=67 // pred_region
          %s1670 = sand.u32 %s208, 1
          %s1671 = scalar_lea.sflag [#allocation4], %s1670
          %s1672 = sand.u32 %s208, 1
          %s1673 = smul.addr %s1672, 16
          %s1674 = scalar_lea.vmem [#allocation7], %s1673
          %1675 = dma.done %s1671, 256
        $region72: #{tpu_custom_call.1} parent=67 // pred_fallthru
          _
      $region68: #{tpu_custom_call.1} parent=5 // pred_fallthru
        _
    $region6: #{tpu_custom_call.1} parent=1 // loop_footer
      %s25 = sadd.s32 1, %s21
    $region7: #{tpu_custom_call.1} parent=1 // loop_footer_branch
      %20 = sbr.rel target = $region3
    $region8: #{tpu_custom_call.1} parent=1 // loop_exit
      _
    %1676 = vsyncpa [#allocation3], 1
    %s1677 = scalar_lea.sflag [#allocation3], 1
    %1678 = vsyncpa %s1677, 1
    %1679 = vsyncpa [#allocation6], 1
    %1680 = vsyncpa [#allocation4], 1
    %s1681 = scalar_lea.sflag [#allocation4], 1
    %1682 = vsyncpa %s1681, 1

</llo_original>
